<compile_context>
chip_gen: v7x
topology: tpu7x:2x2x1
jax: 0.10.0
libtpu: 0.0.40
codegen_flags: <defaults>
</compile_context>

<pallas_src>
import functools

import jax
import jax.numpy as jnp
from jax import lax
from jax.experimental import pallas as pl
from jax.experimental.pallas import tpu as pltpu


def _round_up(x, m):
    return ((x + m - 1) // m) * m


def _leaky_relu(v, slope=0.1):
    return jnp.where(v >= 0, v, slope * v)


# --------------------------------- kernel ---------------------------------

def _resblock_kernel(xc_ref, xhbm_ref, w1_ref, b1_ref, w2_ref, b2_ref,
                     o_ref, lhalo_ref, rhalo_ref, sem,
                     *, dilations, ksize, t_tile, halo, seq_len, per_tap):
    """Fused ResBlock forward on one (batch, T-tile) grid block.

    xc_ref   : (C, t_tile)       auto-pipelined core input block (VMEM)
    xhbm_ref : (B, C, t_pad)     raw HBM ref, used only for the two halo DMAs
    w*_ref   : (NP, K, C, C) if per_tap else (NP, C, K*C), weight-norm folded
    b*_ref   : (NP, C, 1)        f32
    o_ref    : (C, t_tile)
    lhalo/rhalo : (C, halo) VMEM scratch; sem: (2,) DMA semaphores
    """
    C, _ = xc_ref.shape
    W = t_tile + 2 * halo
    t_pad = xhbm_ref.shape[2]
    mm_dtype = w1_ref.dtype
    mm_bytes = jnp.dtype(mm_dtype).itemsize
    # bf16 packs 16 rows per 32-bit sublane tile; only cast before the rolls/slab
    # when C is aligned to that (always true for real HiFi-GAN channel counts).
    cast_early = (C % (8 * (4 // mm_bytes))) == 0

    b = pl.program_id(0)
    j = pl.program_id(1)

    # ---- fetch the left/right halo strips (small DMAs, clamped in-bounds; any
    # out-of-sequence columns the clamp fetches are zeroed by the mask below). ----
    lstart = pl.multiple_of(jnp.maximum(j * t_tile - halo, 0), 128)
    rstart = pl.multiple_of(jnp.minimum((j + 1) * t_tile, t_pad - halo), 128)
    lcopy = pltpu.make_async_copy(xhbm_ref.at[b, :, pl.ds(lstart, halo)],
                                  lhalo_ref, sem.at[0])
    rcopy = pltpu.make_async_copy(xhbm_ref.at[b, :, pl.ds(rstart, halo)],
                                  rhalo_ref, sem.at[1])
    lcopy.start()
    rcopy.start()

    # Hoisted per-conv zero-padding mask: valid <=> absolute position in [0, T).
    # (Multiply by a (1, W) f32 mask is cheaper than a full-tile compare+select.)
    # TODO(synk): could be skipped entirely on interior tiles via lax.cond on j.
    pos = lax.broadcasted_iota(jnp.int32, (1, W), 1) + (j * t_tile - halo)
    mask = ((pos >= 0) & (pos < seq_len)).astype(jnp.float32)

    lcopy.wait()
    rcopy.wait()

    # Full halo'd window, carried in f32 across all six convolutions.
    x = jnp.concatenate([lhalo_ref[...], xc_ref[...], rhalo_ref[...]],
                        axis=1).astype(jnp.float32)                    # (C, W)

    def shifted(v, s):
        # shifted[:, t] == v[:, t + s]; circular-wrap artifacts stay inside the
        # discarded halo (halo >= cumulative receptive field of all six convs).
        if s == 0:
            return v
        return pltpu.roll(v, shift=(-s) % W, axis=1)

    def conv_same(v, w, bias, dil):
        # "same"-padded dilated conv; the mask re-creates the conv's zero padding.
        pad = (ksize * dil - dil) // 2
        v = v * mask                                   # f32, select-free padding
        if cast_early:
            v = v.astype(mm_dtype)                     # bf16 rolls/slab: half traffic
        if per_tap:
            # K accumulating (C, C) @ (C, W) MXU matmuls; no im2col slab copies.
            y = None
            for k in range(ksize):
                tap = shifted(v, k * dil - pad).astype(mm_dtype)
                d = jnp.dot(w[k], tap, preferred_element_type=jnp.float32)
                y = d if y is None else y + d
        else:
            # One (C, K*C) @ (K*C, W) MXU matmul on a k-major im2col slab.
            cols = jnp.concatenate(
                [shifted(v, k * dil - pad) for k in range(ksize)], axis=0)
            y = jnp.dot(w, cols.astype(mm_dtype),
                        preferred_element_type=jnp.float32)
        return y + bias                                # bias added once, f32

    for p, dil in enumerate(dilations):                # static unroll, 3 pairs
        y = conv_same(_leaky_relu(x), w1_ref[p], b1_ref[p], dil)
        y = conv_same(_leaky_relu(y), w2_ref[p], b2_ref[p], 1)
        x = y + x                                      # residual, f32

    # halo is a multiple of 128 -> lane-aligned, unmasked store.
    o_ref[...] = x[:, halo:halo + t_tile].astype(o_ref.dtype)


# --------------------------------- wrapper ---------------------------------

def _vmem_capacity_bytes():
    try:
        cap = int(getattr(pltpu.get_tpu_info(), "vmem_capacity_bytes", 0) or 0)
    except Exception:
        cap = 0
    # Unknown -> assume the small (v7x per-TensorCore) VMEM to stay safe.
    return cap if cap > 0 else 64 * 2**20


def _est_vmem_bytes(C, t_tile, halo, ksize, nparams, per_tap, act_bytes,
                    mm_bytes, w_buffers):
    W = t_tile + 2 * halo
    pipe = 2 * 2 * C * t_tile * act_bytes              # in + out blocks, double-buffered
    halos = 2 * C * halo * act_bytes
    weights = w_buffers * 2 * nparams * ksize * C * C * mm_bytes
    slab = (2 if per_tap else ksize) * C * W * mm_bytes
    temps = 3 * C * W * 4                               # carried x, conv out, epilogue
    return pipe + halos + weights + slab + temps


def _prep_weights(params, C, ksize, per_tap, mm_dtype):
    nparams = len(params)
    if per_tap:
        def arrange(w):                                 # (Co, Ci, K) -> (K, Co, Ci)
            return jnp.transpose(w, (2, 0, 1))
    else:
        def arrange(w):                                 # (Co, Ci, K) -> (Co, K*Ci), k-major
            return jnp.transpose(w, (0, 2, 1)).reshape(C, ksize * C)
    w1 = jnp.stack([arrange(p["w1"]) for p in params], 0).astype(mm_dtype)
    w2 = jnp.stack([arrange(p["w2"]) for p in params], 0).astype(mm_dtype)
    b1 = jnp.stack([p["b1"] for p in params], 0).reshape(nparams, C, 1).astype(jnp.float32)
    b2 = jnp.stack([p["b2"] for p in params], 0).reshape(nparams, C, 1).astype(jnp.float32)
    return w1, b1, w2, b2


def resblock_forward(x, params, kernel_size=3, t_tile=None, use_bf16=True,
                     conv_mode="auto"):
    """HiFi-GAN ResBlock forward. x: (B, C, T) float. Returns (B, C, T) of x.dtype."""
    assert kernel_size % 2 == 1, "odd kernel_size required for 'same' padding"
    B, C, T = x.shape
    nparams = len(params)
    dilations = tuple(int(p["dil"]) for p in params)

    # Cumulative receptive field of the 2*len(dilations) convolutions.
    rf = sum((kernel_size * d - d) // 2 + (kernel_size - 1) // 2 for d in dilations)
    halo = max(128, _round_up(rf, 128))     # 128-aligned => lane-aligned epilogue slice
    assert halo >= rf, "halo must cover the cumulative receptive field"

    per_tap = (C >= 256) if conv_mode == "auto" else (conv_mode == "per_tap")
    mm_dtype = jnp.bfloat16 if use_bf16 else jnp.float32
    act_bytes = x.dtype.itemsize
    mm_bytes = jnp.dtype(mm_dtype).itemsize
    single_buffer_w = C >= 128              # grid-invariant weights: 1 buffer is enough
    w_buffers = 1 if single_buffer_w else 2

    cap = _vmem_capacity_bytes()
    budget = min(int(cap * 0.75), 96 * 2**20)

    auto_tile = t_tile is None
    if auto_tile:
        t_max = 2048 if cap >= (100 << 20) else 1024   # big-VMEM (v5e/v6e) vs v7x
        t_tile = max(halo, 128)
        for cand in (2048, 1024, 512, 256):
            if cand > t_max or cand <= t_tile:
                continue
            if _est_vmem_bytes(C, cand, halo, kernel_size, nparams, per_tap,
                               act_bytes, mm_bytes, w_buffers) <= budget:
                t_tile = cand
                break
    t_tile = min(int(t_tile), _round_up(T, 128))
    t_tile = max(128, halo, _round_up(t_tile, 128))
    if auto_tile:
        # Keep >= 2 grid blocks so both v7x TensorCores stay busy.
        while B * pl.cdiv(T, t_tile) < 2 and t_tile // 2 >= max(128, halo):
            t_tile = max(max(128, halo), _round_up(t_tile // 2, 128))

    nt = pl.cdiv(T, t_tile)
    t_pad = nt * t_tile
    xc = x if t_pad == T else jnp.pad(x, ((0, 0), (0, 0), (0, t_pad - T)))

    w1, b1, w2, b2 = _prep_weights(params, C, kernel_size, per_tap, mm_dtype)

    def _wspec(shape):
        imap = lambda b, j, _n=len(shape): (0,) * _n
        if single_buffer_w:
            try:
                return pl.BlockSpec(shape, imap, pipeline_mode=pl.Buffered(1))
            except Exception:
                pass
        return pl.BlockSpec(shape, imap)

    kern = functools.partial(
        _resblock_kernel, dilations=dilations, ksize=kernel_size,
        t_tile=t_tile, halo=halo, seq_len=T, per_tap=per_tap)

    out = pl.pallas_call(
        kern,
        out_shape=jax.ShapeDtypeStruct((B, C, t_pad), x.dtype),
        grid=(B, nt),
        in_specs=[
            pl.BlockSpec((None, C, t_tile), lambda b, j: (b, 0, j)),  # core block
            pl.BlockSpec(memory_space=pl.ANY),                         # HBM ref (halo DMAs)
            _wspec(w1.shape), _wspec(b1.shape),
            _wspec(w2.shape), _wspec(b2.shape),
        ],
        out_specs=pl.BlockSpec((None, C, t_tile), lambda b, j: (b, 0, j)),
        scratch_shapes=[
            pltpu.VMEM((C, halo), x.dtype),
            pltpu.VMEM((C, halo), x.dtype),
            pltpu.SemaphoreType.DMA((2,)),
        ],
        compiler_params=pltpu.CompilerParams(
            dimension_semantics=("parallel", "parallel"),
            vmem_limit_bytes=int(max(budget, 32 * 2**20))),
    )(xc, xc, w1, b1, w2, b2)

    return out if t_pad == T else out[:, :, :T]


# -------------------- parameter construction (plain JAX glue) --------------------

def _weight_norm(v, g):
    # PyTorch weight_norm(dim=0): per-output-channel norm over (in_channels, kernel).
    norm = jnp.sqrt(jnp.sum(v * v, axis=(1, 2), keepdims=True))
    return g * v / norm


def init_resblock_params(key, channels, kernel_size=3, dilation=(1, 3, 5)):
    params = []
    for i in range(len(dilation)):
        key, k1, k2, k3, k4, k5, k6 = jax.random.split(key, 7)
        scale = 0.1
        v1 = jax.random.normal(k1, (channels, channels, kernel_size), jnp.float32) * scale
        g1 = 1.0 + 0.01 * jax.random.normal(k2, (channels, 1, 1), jnp.float32)
        b1 = 0.01 * jax.random.normal(k3, (channels,), jnp.float32)
        v2 = jax.random.normal(k4, (channels, channels, kernel_size), jnp.float32) * scale
        g2 = 1.0 + 0.01 * jax.random.normal(k5, (channels, 1, 1), jnp.float32)
        b2 = 0.01 * jax.random.normal(k6, (channels,), jnp.float32)
        params.append(dict(w1=_weight_norm(v1, g1), b1=b1,
                           w2=_weight_norm(v2, g2), b2=b2, dil=dilation[i]))
    return params


# -------------------- pure-JAX reference for verification --------------------

def _conv1d_ref(x, w, b, dil, ksize):
    pad = (ksize * dil - dil) // 2
    y = lax.conv_general_dilated(
        x, w, window_strides=(1,), padding=[(pad, pad)], rhs_dilation=(dil,),
        dimension_numbers=("NCH", "OIH", "NCH"), precision=lax.Precision.HIGHEST)
    return y + b[None, :, None]


def resblock_ref(x, params, kernel_size=3):
    for p in params:
        xt = jnp.where(x >= 0, x, 0.1 * x)
        xt = _conv1d_ref(xt, p["w1"], p["b1"], int(p["dil"]), kernel_size)
        xt = jnp.where(xt >= 0, xt, 0.1 * xt)
        xt = _conv1d_ref(xt, p["w2"], p["b2"], 1, kernel_size)
        x = xt + x
    return x


if __name__ == "__main__":
    key = jax.random.PRNGKey(0)
    k_x, k_p = jax.random.split(key)

    # Small but tiling-exercising shapes: 3 T-tiles (last one ragged), 2 batches.
    B, C, T = 2, 8, 320
    kernel_size = 3
    dilation = (1, 3, 5)

    x = jax.random.normal(k_x, (B, C, T), jnp.float32)
    params = init_resblock_params(k_p, C, kernel_size, dilation)
    ref = jax.block_until_ready(resblock_ref(x, params, kernel_size))

    # Path 1: im2col-slab conv (the small-C path), bf16 MXU operands, 3 tiles.
    out1 = jax.block_until_ready(
        resblock_forward(x, params, kernel_size, t_tile=128, use_bf16=True))
    assert out1.shape == (B, C, T)
    err1 = float(jnp.max(jnp.abs(out1 - ref)))
    assert jnp.allclose(out1, ref, atol=5e-2, rtol=5e-2), \
        f"im2col path mismatch vs reference (max abs err {err1})"

    # Path 2: per-tap accumulating matmuls (the C>=256 path), f32 MXU operands.
    out2 = jax.block_until_ready(
        resblock_forward(x, params, kernel_size, t_tile=128, use_bf16=False,
                         conv_mode="per_tap"))
    err2 = float(jnp.max(jnp.abs(out2 - ref)))
    assert jnp.allclose(out2, ref, atol=5e-2, rtol=5e-2), \
        f"per-tap path mismatch vs reference (max abs err {err2})"

    # Path 3: fully automatic (generation-aware) tile selection.
    out3 = jax.block_until_ready(resblock_forward(x, params, kernel_size))
    err3 = float(jnp.max(jnp.abs(out3 - ref)))
    assert jnp.allclose(out3, ref, atol=5e-2, rtol=5e-2), \
        f"auto-tile path mismatch vs reference (max abs err {err3})"

    print("KERNEL_OK")
</pallas_src>

<mosaic_0001>
module attributes {stable_mosaic.version = 11 : i64} {
  func.func @_resblock_kernel(%arg0: i32, %arg1: i32, %arg2: memref<1x8x128xf32, #tpu.memory_space<vmem>>, %arg3: memref<2x8x384xf32, #tpu.memory_space<any>>, %arg4: memref<3x8x24xbf16, #tpu.memory_space<vmem>>, %arg5: memref<3x8x1xf32, #tpu.memory_space<vmem>>, %arg6: memref<3x8x24xbf16, #tpu.memory_space<vmem>>, %arg7: memref<3x8x1xf32, #tpu.memory_space<vmem>>, %arg8: memref<1x8x128xf32, #tpu.memory_space<vmem>>, %arg9: memref<8x128xf32, #tpu.memory_space<vmem>>, %arg10: memref<8x128xf32, #tpu.memory_space<vmem>>, %arg11: memref<2x!tpu.dma_semaphore, #tpu.memory_space<semaphore_mem>>) attributes {dimension_semantics = [#tpu.dimension_semantics<parallel>, #tpu.dimension_semantics<parallel>], iteration_bounds = array<i64: 2, 3>, scalar_prefetch = 0 : i64, scratch_operands = 3 : i64, tpu.core_type = #tpu.core_type<tc>, window_params = [{transform_indices = @transform_0, window_bounds = array<i64: 1, 8, 128>}, {}, {pipeline_mode = #tpu.pipeline_mode<synchronous>, transform_indices = @transform_2, window_bounds = array<i64: 3, 8, 24>}, {pipeline_mode = #tpu.pipeline_mode<synchronous>, transform_indices = @transform_3, window_bounds = array<i64: 3, 8, 1>}, {pipeline_mode = #tpu.pipeline_mode<synchronous>, transform_indices = @transform_4, window_bounds = array<i64: 3, 8, 24>}, {pipeline_mode = #tpu.pipeline_mode<synchronous>, transform_indices = @transform_5, window_bounds = array<i64: 3, 8, 1>}, {transform_indices = @transform_6, window_bounds = array<i64: 1, 8, 128>}]} {
    %c128_i32 = arith.constant 128 : i32
    %0 = arith.muli %arg1, %c128_i32 : i32
    %c128_i32_0 = arith.constant 128 : i32
    %1 = arith.subi %0, %c128_i32_0 : i32
    %c0_i32 = arith.constant 0 : i32
    %2 = arith.maxsi %1, %c0_i32 : i32
    %3 = tpu.assume_multiple %2, 128 : i32
    %c1_i32 = arith.constant 1 : i32
    %4 = arith.addi %arg1, %c1_i32 : i32
    %c128_i32_1 = arith.constant 128 : i32
    %5 = arith.muli %4, %c128_i32_1 : i32
    %c256_i32 = arith.constant 256 : i32
    %6 = arith.minsi %5, %c256_i32 : i32
    %7 = tpu.assume_multiple %6, 128 : i32
    %c0_i32_2 = arith.constant 0 : i32
    %c0_i32_3 = arith.constant 0 : i32
    %8 = tpu.memref_slice %arg3[%arg0, %c0_i32_3, %3] : memref<2x8x384xf32, #tpu.memory_space<any>> -> memref<1x8x128xf32, #tpu.memory_space<any>>
    %9 = tpu.memref_squeeze %8 : memref<1x8x128xf32, #tpu.memory_space<any>> -> memref<8x128xf32, #tpu.memory_space<any>>
    %10 = tpu.memref_slice %arg11[%c0_i32_2] : memref<2x!tpu.dma_semaphore, #tpu.memory_space<semaphore_mem>> -> memref<1x!tpu.dma_semaphore, #tpu.memory_space<semaphore_mem>>
    %11 = tpu.memref_squeeze %10 : memref<1x!tpu.dma_semaphore, #tpu.memory_space<semaphore_mem>> -> memref<!tpu.dma_semaphore, #tpu.memory_space<semaphore_mem>>
    tpu.enqueue_dma source(%9 : memref<8x128xf32, #tpu.memory_space<any>>) target(%arg9 : memref<8x128xf32, #tpu.memory_space<vmem>>) target_semaphore(%11 : memref<!tpu.dma_semaphore, #tpu.memory_space<semaphore_mem>>)
    %c1_i32_4 = arith.constant 1 : i32
    %c0_i32_5 = arith.constant 0 : i32
    %12 = tpu.memref_slice %arg3[%arg0, %c0_i32_5, %7] : memref<2x8x384xf32, #tpu.memory_space<any>> -> memref<1x8x128xf32, #tpu.memory_space<any>>
    %13 = tpu.memref_squeeze %12 : memref<1x8x128xf32, #tpu.memory_space<any>> -> memref<8x128xf32, #tpu.memory_space<any>>
    %14 = tpu.memref_slice %arg11[%c1_i32_4] : memref<2x!tpu.dma_semaphore, #tpu.memory_space<semaphore_mem>> -> memref<1x!tpu.dma_semaphore, #tpu.memory_space<semaphore_mem>>
    %15 = tpu.memref_squeeze %14 : memref<1x!tpu.dma_semaphore, #tpu.memory_space<semaphore_mem>> -> memref<!tpu.dma_semaphore, #tpu.memory_space<semaphore_mem>>
    tpu.enqueue_dma source(%13 : memref<8x128xf32, #tpu.memory_space<any>>) target(%arg10 : memref<8x128xf32, #tpu.memory_space<vmem>>) target_semaphore(%15 : memref<!tpu.dma_semaphore, #tpu.memory_space<semaphore_mem>>)
    %16 = tpu.iota {dimensions = array<i32: 1>} : vector<1x384xi32>
    %c128_i32_6 = arith.constant 128 : i32
    %17 = arith.muli %arg1, %c128_i32_6 : i32
    %c128_i32_7 = arith.constant 128 : i32
    %18 = arith.subi %17, %c128_i32_7 : i32
    %19 = vector.broadcast %18 : i32 to vector<1x384xi32>
    %20 = arith.addi %16, %19 : vector<1x384xi32>
    %c0_i32_8 = arith.constant 0 : i32
    %21 = vector.broadcast %c0_i32_8 : i32 to vector<1x384xi32>
    %22 = arith.cmpi sge, %20, %21 : vector<1x384xi32>
    %c320_i32 = arith.constant 320 : i32
    %23 = vector.broadcast %c320_i32 : i32 to vector<1x384xi32>
    %24 = arith.cmpi slt, %20, %23 : vector<1x384xi32>
    %25 = arith.andi %22, %24 : vector<1x384xi1>
    %26 = arith.extui %25 : vector<1x384xi1> to vector<1x384xi32>
    %27 = arith.sitofp %26 : vector<1x384xi32> to vector<1x384xf32>
    %c0_i32_9 = arith.constant 0 : i32
    %c0_i32_10 = arith.constant 0 : i32
    %28 = tpu.memref_slice %arg3[%arg0, %c0_i32_10, %3] : memref<2x8x384xf32, #tpu.memory_space<any>> -> memref<1x8x128xf32, #tpu.memory_space<any>>
    %29 = tpu.memref_squeeze %28 : memref<1x8x128xf32, #tpu.memory_space<any>> -> memref<8x128xf32, #tpu.memory_space<any>>
    %30 = tpu.memref_slice %arg11[%c0_i32_9] : memref<2x!tpu.dma_semaphore, #tpu.memory_space<semaphore_mem>> -> memref<1x!tpu.dma_semaphore, #tpu.memory_space<semaphore_mem>>
    %31 = tpu.memref_squeeze %30 : memref<1x!tpu.dma_semaphore, #tpu.memory_space<semaphore_mem>> -> memref<!tpu.dma_semaphore, #tpu.memory_space<semaphore_mem>>
    tpu.wait_dma2 semaphore(%31 : memref<!tpu.dma_semaphore, #tpu.memory_space<semaphore_mem>>) src(%29 : memref<8x128xf32, #tpu.memory_space<any>>) dst(%arg9 : memref<8x128xf32, #tpu.memory_space<vmem>>)
    %c1_i32_11 = arith.constant 1 : i32
    %c0_i32_12 = arith.constant 0 : i32
    %32 = tpu.memref_slice %arg3[%arg0, %c0_i32_12, %7] : memref<2x8x384xf32, #tpu.memory_space<any>> -> memref<1x8x128xf32, #tpu.memory_space<any>>
    %33 = tpu.memref_squeeze %32 : memref<1x8x128xf32, #tpu.memory_space<any>> -> memref<8x128xf32, #tpu.memory_space<any>>
    %34 = tpu.memref_slice %arg11[%c1_i32_11] : memref<2x!tpu.dma_semaphore, #tpu.memory_space<semaphore_mem>> -> memref<1x!tpu.dma_semaphore, #tpu.memory_space<semaphore_mem>>
    %35 = tpu.memref_squeeze %34 : memref<1x!tpu.dma_semaphore, #tpu.memory_space<semaphore_mem>> -> memref<!tpu.dma_semaphore, #tpu.memory_space<semaphore_mem>>
    tpu.wait_dma2 semaphore(%35 : memref<!tpu.dma_semaphore, #tpu.memory_space<semaphore_mem>>) src(%33 : memref<8x128xf32, #tpu.memory_space<any>>) dst(%arg10 : memref<8x128xf32, #tpu.memory_space<vmem>>)
    %c0 = arith.constant 0 : index
    %c0_13 = arith.constant 0 : index
    %36 = vector.load %arg9[%c0, %c0_13] : memref<8x128xf32, #tpu.memory_space<vmem>>, vector<8x128xf32>
    %c0_14 = arith.constant 0 : index
    %c0_15 = arith.constant 0 : index
    %c0_16 = arith.constant 0 : index
    %37 = vector.load %arg2[%c0_14, %c0_15, %c0_16] : memref<1x8x128xf32, #tpu.memory_space<vmem>>, vector<1x8x128xf32>
    %38 = vector.shape_cast %37 : vector<1x8x128xf32> to vector<8x128xf32>
    %c0_17 = arith.constant 0 : index
    %c0_18 = arith.constant 0 : index
    %39 = vector.load %arg10[%c0_17, %c0_18] : memref<8x128xf32, #tpu.memory_space<vmem>>, vector<8x128xf32>
    %40 = tpu.concatenate %36, %38, %39 in 1 : vector<8x128xf32>, vector<8x128xf32>, vector<8x128xf32> -> vector<8x384xf32>
    %cst = arith.constant 0.000000e+00 : f32
    %41 = vector.broadcast %cst : f32 to vector<8x384xf32>
    %42 = arith.cmpf oge, %40, %41 : vector<8x384xf32>
    %cst_19 = arith.constant 1.000000e-01 : f32
    %43 = vector.broadcast %cst_19 : f32 to vector<8x384xf32>
    %44 = arith.mulf %43, %40 : vector<8x384xf32>
    %45 = arith.select %42, %40, %44 : vector<8x384xi1>, vector<8x384xf32>
    %c0_20 = arith.constant 0 : index
    %c0_21 = arith.constant 0 : index
    %c0_22 = arith.constant 0 : index
    %46 = vector.load %arg4[%c0_20, %c0_21, %c0_22] : memref<3x8x24xbf16, #tpu.memory_space<vmem>>, vector<1x8x24xbf16>
    %47 = vector.shape_cast %46 : vector<1x8x24xbf16> to vector<8x24xbf16>
    %c0_23 = arith.constant 0 : index
    %c0_24 = arith.constant 0 : index
    %c0_25 = arith.constant 0 : index
    %48 = vector.load %arg5[%c0_23, %c0_24, %c0_25] : memref<3x8x1xf32, #tpu.memory_space<vmem>>, vector<1x8x1xf32>
    %49 = vector.shape_cast %48 : vector<1x8x1xf32> to vector<8x1xf32>
    %50 = vector.broadcast %27 : vector<1x384xf32> to vector<8x384xf32>
    %51 = arith.mulf %45, %50 : vector<8x384xf32>
    %c1_i32_26 = arith.constant 1 : i32
    %52 = tpu.dynamic_rotate %51 by %c1_i32_26 dim 1 : vector<8x384xf32>, i32 -> vector<8x384xf32>
    %c383_i32 = arith.constant 383 : i32
    %53 = tpu.dynamic_rotate %51 by %c383_i32 dim 1 : vector<8x384xf32>, i32 -> vector<8x384xf32>
    %54 = tpu.concatenate %52, %51, %53 in 0 : vector<8x384xf32>, vector<8x384xf32>, vector<8x384xf32> -> vector<24x384xf32>
    %55 = arith.truncf %54 : vector<24x384xf32> to vector<24x384xbf16>
    %cst_27 = arith.constant dense<0.000000e+00> : vector<8x384xf32>
    %56 = tpu.matmul %47, %55, %cst_27 {dimension_numbers = #tpu.dot_dimension_numbers<[1], [0], [0], [1], [0, 0, 1, 1], [], []>} : vector<8x24xbf16>, vector<24x384xbf16>, vector<8x384xf32> -> vector<8x384xf32>
    %57 = vector.broadcast %49 : vector<8x1xf32> to vector<8x384xf32>
    %58 = arith.addf %56, %57 : vector<8x384xf32>
    %cst_28 = arith.constant 0.000000e+00 : f32
    %59 = vector.broadcast %cst_28 : f32 to vector<8x384xf32>
    %60 = arith.cmpf oge, %58, %59 : vector<8x384xf32>
    %cst_29 = arith.constant 1.000000e-01 : f32
    %61 = vector.broadcast %cst_29 : f32 to vector<8x384xf32>
    %62 = arith.mulf %61, %58 : vector<8x384xf32>
    %63 = arith.select %60, %58, %62 : vector<8x384xi1>, vector<8x384xf32>
    %c0_30 = arith.constant 0 : index
    %c0_31 = arith.constant 0 : index
    %c0_32 = arith.constant 0 : index
    %64 = vector.load %arg6[%c0_30, %c0_31, %c0_32] : memref<3x8x24xbf16, #tpu.memory_space<vmem>>, vector<1x8x24xbf16>
    %65 = vector.shape_cast %64 : vector<1x8x24xbf16> to vector<8x24xbf16>
    %c0_33 = arith.constant 0 : index
    %c0_34 = arith.constant 0 : index
    %c0_35 = arith.constant 0 : index
    %66 = vector.load %arg7[%c0_33, %c0_34, %c0_35] : memref<3x8x1xf32, #tpu.memory_space<vmem>>, vector<1x8x1xf32>
    %67 = vector.shape_cast %66 : vector<1x8x1xf32> to vector<8x1xf32>
    %68 = vector.broadcast %27 : vector<1x384xf32> to vector<8x384xf32>
    %69 = arith.mulf %63, %68 : vector<8x384xf32>
    %c1_i32_36 = arith.constant 1 : i32
    %70 = tpu.dynamic_rotate %69 by %c1_i32_36 dim 1 : vector<8x384xf32>, i32 -> vector<8x384xf32>
    %c383_i32_37 = arith.constant 383 : i32
    %71 = tpu.dynamic_rotate %69 by %c383_i32_37 dim 1 : vector<8x384xf32>, i32 -> vector<8x384xf32>
    %72 = tpu.concatenate %70, %69, %71 in 0 : vector<8x384xf32>, vector<8x384xf32>, vector<8x384xf32> -> vector<24x384xf32>
    %73 = arith.truncf %72 : vector<24x384xf32> to vector<24x384xbf16>
    %cst_38 = arith.constant dense<0.000000e+00> : vector<8x384xf32>
    %74 = tpu.matmul %65, %73, %cst_38 {dimension_numbers = #tpu.dot_dimension_numbers<[1], [0], [0], [1], [0, 0, 1, 1], [], []>} : vector<8x24xbf16>, vector<24x384xbf16>, vector<8x384xf32> -> vector<8x384xf32>
    %75 = vector.broadcast %67 : vector<8x1xf32> to vector<8x384xf32>
    %76 = arith.addf %74, %75 : vector<8x384xf32>
    %77 = arith.addf %76, %40 : vector<8x384xf32>
    %cst_39 = arith.constant 0.000000e+00 : f32
    %78 = vector.broadcast %cst_39 : f32 to vector<8x384xf32>
    %79 = arith.cmpf oge, %77, %78 : vector<8x384xf32>
    %cst_40 = arith.constant 1.000000e-01 : f32
    %80 = vector.broadcast %cst_40 : f32 to vector<8x384xf32>
    %81 = arith.mulf %80, %77 : vector<8x384xf32>
    %82 = arith.select %79, %77, %81 : vector<8x384xi1>, vector<8x384xf32>
    %c1 = arith.constant 1 : index
    %c0_41 = arith.constant 0 : index
    %c0_42 = arith.constant 0 : index
    %83 = vector.load %arg4[%c1, %c0_41, %c0_42] : memref<3x8x24xbf16, #tpu.memory_space<vmem>>, vector<1x8x24xbf16>
    %84 = vector.shape_cast %83 : vector<1x8x24xbf16> to vector<8x24xbf16>
    %c1_43 = arith.constant 1 : index
    %c0_44 = arith.constant 0 : index
    %c0_45 = arith.constant 0 : index
    %85 = vector.load %arg5[%c1_43, %c0_44, %c0_45] : memref<3x8x1xf32, #tpu.memory_space<vmem>>, vector<1x8x1xf32>
    %86 = vector.shape_cast %85 : vector<1x8x1xf32> to vector<8x1xf32>
    %87 = vector.broadcast %27 : vector<1x384xf32> to vector<8x384xf32>
    %88 = arith.mulf %82, %87 : vector<8x384xf32>
    %c3_i32 = arith.constant 3 : i32
    %89 = tpu.dynamic_rotate %88 by %c3_i32 dim 1 : vector<8x384xf32>, i32 -> vector<8x384xf32>
    %c381_i32 = arith.constant 381 : i32
    %90 = tpu.dynamic_rotate %88 by %c381_i32 dim 1 : vector<8x384xf32>, i32 -> vector<8x384xf32>
    %91 = tpu.concatenate %89, %88, %90 in 0 : vector<8x384xf32>, vector<8x384xf32>, vector<8x384xf32> -> vector<24x384xf32>
    %92 = arith.truncf %91 : vector<24x384xf32> to vector<24x384xbf16>
    %cst_46 = arith.constant dense<0.000000e+00> : vector<8x384xf32>
    %93 = tpu.matmul %84, %92, %cst_46 {dimension_numbers = #tpu.dot_dimension_numbers<[1], [0], [0], [1], [0, 0, 1, 1], [], []>} : vector<8x24xbf16>, vector<24x384xbf16>, vector<8x384xf32> -> vector<8x384xf32>
    %94 = vector.broadcast %86 : vector<8x1xf32> to vector<8x384xf32>
    %95 = arith.addf %93, %94 : vector<8x384xf32>
    %cst_47 = arith.constant 0.000000e+00 : f32
    %96 = vector.broadcast %cst_47 : f32 to vector<8x384xf32>
    %97 = arith.cmpf oge, %95, %96 : vector<8x384xf32>
    %cst_48 = arith.constant 1.000000e-01 : f32
    %98 = vector.broadcast %cst_48 : f32 to vector<8x384xf32>
    %99 = arith.mulf %98, %95 : vector<8x384xf32>
    %100 = arith.select %97, %95, %99 : vector<8x384xi1>, vector<8x384xf32>
    %c1_49 = arith.constant 1 : index
    %c0_50 = arith.constant 0 : index
    %c0_51 = arith.constant 0 : index
    %101 = vector.load %arg6[%c1_49, %c0_50, %c0_51] : memref<3x8x24xbf16, #tpu.memory_space<vmem>>, vector<1x8x24xbf16>
    %102 = vector.shape_cast %101 : vector<1x8x24xbf16> to vector<8x24xbf16>
    %c1_52 = arith.constant 1 : index
    %c0_53 = arith.constant 0 : index
    %c0_54 = arith.constant 0 : index
    %103 = vector.load %arg7[%c1_52, %c0_53, %c0_54] : memref<3x8x1xf32, #tpu.memory_space<vmem>>, vector<1x8x1xf32>
    %104 = vector.shape_cast %103 : vector<1x8x1xf32> to vector<8x1xf32>
    %105 = vector.broadcast %27 : vector<1x384xf32> to vector<8x384xf32>
    %106 = arith.mulf %100, %105 : vector<8x384xf32>
    %c1_i32_55 = arith.constant 1 : i32
    %107 = tpu.dynamic_rotate %106 by %c1_i32_55 dim 1 : vector<8x384xf32>, i32 -> vector<8x384xf32>
    %c383_i32_56 = arith.constant 383 : i32
    %108 = tpu.dynamic_rotate %106 by %c383_i32_56 dim 1 : vector<8x384xf32>, i32 -> vector<8x384xf32>
    %109 = tpu.concatenate %107, %106, %108 in 0 : vector<8x384xf32>, vector<8x384xf32>, vector<8x384xf32> -> vector<24x384xf32>
    %110 = arith.truncf %109 : vector<24x384xf32> to vector<24x384xbf16>
    %cst_57 = arith.constant dense<0.000000e+00> : vector<8x384xf32>
    %111 = tpu.matmul %102, %110, %cst_57 {dimension_numbers = #tpu.dot_dimension_numbers<[1], [0], [0], [1], [0, 0, 1, 1], [], []>} : vector<8x24xbf16>, vector<24x384xbf16>, vector<8x384xf32> -> vector<8x384xf32>
    %112 = vector.broadcast %104 : vector<8x1xf32> to vector<8x384xf32>
    %113 = arith.addf %111, %112 : vector<8x384xf32>
    %114 = arith.addf %113, %77 : vector<8x384xf32>
    %cst_58 = arith.constant 0.000000e+00 : f32
    %115 = vector.broadcast %cst_58 : f32 to vector<8x384xf32>
    %116 = arith.cmpf oge, %114, %115 : vector<8x384xf32>
    %cst_59 = arith.constant 1.000000e-01 : f32
    %117 = vector.broadcast %cst_59 : f32 to vector<8x384xf32>
    %118 = arith.mulf %117, %114 : vector<8x384xf32>
    %119 = arith.select %116, %114, %118 : vector<8x384xi1>, vector<8x384xf32>
    %c2 = arith.constant 2 : index
    %c0_60 = arith.constant 0 : index
    %c0_61 = arith.constant 0 : index
    %120 = vector.load %arg4[%c2, %c0_60, %c0_61] : memref<3x8x24xbf16, #tpu.memory_space<vmem>>, vector<1x8x24xbf16>
    %121 = vector.shape_cast %120 : vector<1x8x24xbf16> to vector<8x24xbf16>
    %c2_62 = arith.constant 2 : index
    %c0_63 = arith.constant 0 : index
    %c0_64 = arith.constant 0 : index
    %122 = vector.load %arg5[%c2_62, %c0_63, %c0_64] : memref<3x8x1xf32, #tpu.memory_space<vmem>>, vector<1x8x1xf32>
    %123 = vector.shape_cast %122 : vector<1x8x1xf32> to vector<8x1xf32>
    %124 = vector.broadcast %27 : vector<1x384xf32> to vector<8x384xf32>
    %125 = arith.mulf %119, %124 : vector<8x384xf32>
    %c5_i32 = arith.constant 5 : i32
    %126 = tpu.dynamic_rotate %125 by %c5_i32 dim 1 : vector<8x384xf32>, i32 -> vector<8x384xf32>
    %c379_i32 = arith.constant 379 : i32
    %127 = tpu.dynamic_rotate %125 by %c379_i32 dim 1 : vector<8x384xf32>, i32 -> vector<8x384xf32>
    %128 = tpu.concatenate %126, %125, %127 in 0 : vector<8x384xf32>, vector<8x384xf32>, vector<8x384xf32> -> vector<24x384xf32>
    %129 = arith.truncf %128 : vector<24x384xf32> to vector<24x384xbf16>
    %cst_65 = arith.constant dense<0.000000e+00> : vector<8x384xf32>
    %130 = tpu.matmul %121, %129, %cst_65 {dimension_numbers = #tpu.dot_dimension_numbers<[1], [0], [0], [1], [0, 0, 1, 1], [], []>} : vector<8x24xbf16>, vector<24x384xbf16>, vector<8x384xf32> -> vector<8x384xf32>
    %131 = vector.broadcast %123 : vector<8x1xf32> to vector<8x384xf32>
    %132 = arith.addf %130, %131 : vector<8x384xf32>
    %cst_66 = arith.constant 0.000000e+00 : f32
    %133 = vector.broadcast %cst_66 : f32 to vector<8x384xf32>
    %134 = arith.cmpf oge, %132, %133 : vector<8x384xf32>
    %cst_67 = arith.constant 1.000000e-01 : f32
    %135 = vector.broadcast %cst_67 : f32 to vector<8x384xf32>
    %136 = arith.mulf %135, %132 : vector<8x384xf32>
    %137 = arith.select %134, %132, %136 : vector<8x384xi1>, vector<8x384xf32>
    %c2_68 = arith.constant 2 : index
    %c0_69 = arith.constant 0 : index
    %c0_70 = arith.constant 0 : index
    %138 = vector.load %arg6[%c2_68, %c0_69, %c0_70] : memref<3x8x24xbf16, #tpu.memory_space<vmem>>, vector<1x8x24xbf16>
    %139 = vector.shape_cast %138 : vector<1x8x24xbf16> to vector<8x24xbf16>
    %c2_71 = arith.constant 2 : index
    %c0_72 = arith.constant 0 : index
    %c0_73 = arith.constant 0 : index
    %140 = vector.load %arg7[%c2_71, %c0_72, %c0_73] : memref<3x8x1xf32, #tpu.memory_space<vmem>>, vector<1x8x1xf32>
    %141 = vector.shape_cast %140 : vector<1x8x1xf32> to vector<8x1xf32>
    %142 = vector.broadcast %27 : vector<1x384xf32> to vector<8x384xf32>
    %143 = arith.mulf %137, %142 : vector<8x384xf32>
    %c1_i32_74 = arith.constant 1 : i32
    %144 = tpu.dynamic_rotate %143 by %c1_i32_74 dim 1 : vector<8x384xf32>, i32 -> vector<8x384xf32>
    %c383_i32_75 = arith.constant 383 : i32
    %145 = tpu.dynamic_rotate %143 by %c383_i32_75 dim 1 : vector<8x384xf32>, i32 -> vector<8x384xf32>
    %146 = tpu.concatenate %144, %143, %145 in 0 : vector<8x384xf32>, vector<8x384xf32>, vector<8x384xf32> -> vector<24x384xf32>
    %147 = arith.truncf %146 : vector<24x384xf32> to vector<24x384xbf16>
    %cst_76 = arith.constant dense<0.000000e+00> : vector<8x384xf32>
    %148 = tpu.matmul %139, %147, %cst_76 {dimension_numbers = #tpu.dot_dimension_numbers<[1], [0], [0], [1], [0, 0, 1, 1], [], []>} : vector<8x24xbf16>, vector<24x384xbf16>, vector<8x384xf32> -> vector<8x384xf32>
    %149 = vector.broadcast %141 : vector<8x1xf32> to vector<8x384xf32>
    %150 = arith.addf %148, %149 : vector<8x384xf32>
    %151 = arith.addf %150, %114 : vector<8x384xf32>
    %152 = vector.extract_strided_slice %151 {offsets = [0, 128], sizes = [8, 128], strides = [1, 1]} : vector<8x384xf32> to vector<8x128xf32>
    %c0_77 = arith.constant 0 : index
    %c0_78 = arith.constant 0 : index
    %c0_79 = arith.constant 0 : index
    %153 = vector.load %arg8[%c0_77, %c0_78, %c0_79] : memref<1x8x128xf32, #tpu.memory_space<vmem>>, vector<1x8x128xf32>
    %154 = vector.shape_cast %153 : vector<1x8x128xf32> to vector<8x128xf32>
    %155 = vector.shape_cast %152 : vector<8x128xf32> to vector<1x8x128xf32>
    tpu.vector_store %arg8[%c0_77, %c0_78, %c0_79], %155 {strides = array<i32>} : memref<1x8x128xf32, #tpu.memory_space<vmem>>, vector<1x8x128xf32>,
    return
  }
  func.func @transform_0(%arg0: i32, %arg1: i32) -> (i32, i32, i32) {
    %c0_i32 = arith.constant 0 : i32
    %c0_i32_0 = arith.constant 0 : i32
    return %arg0, %c0_i32, %arg1 : i32, i32, i32
  }
  func.func @transform_2(%arg0: i32, %arg1: i32) -> (i32, i32, i32) {
    %c0_i32 = arith.constant 0 : i32
    %c0_i32_0 = arith.constant 0 : i32
    %c0_i32_1 = arith.constant 0 : i32
    %c0_i32_2 = arith.constant 0 : i32
    return %c0_i32, %c0_i32_0, %c0_i32_1 : i32, i32, i32
  }
  func.func @transform_3(%arg0: i32, %arg1: i32) -> (i32, i32, i32) {
    %c0_i32 = arith.constant 0 : i32
    %c0_i32_0 = arith.constant 0 : i32
    %c0_i32_1 = arith.constant 0 : i32
    %c0_i32_2 = arith.constant 0 : i32
    return %c0_i32, %c0_i32_0, %c0_i32_1 : i32, i32, i32
  }
  func.func @transform_4(%arg0: i32, %arg1: i32) -> (i32, i32, i32) {
    %c0_i32 = arith.constant 0 : i32
    %c0_i32_0 = arith.constant 0 : i32
    %c0_i32_1 = arith.constant 0 : i32
    %c0_i32_2 = arith.constant 0 : i32
    return %c0_i32, %c0_i32_0, %c0_i32_1 : i32, i32, i32
  }
  func.func @transform_5(%arg0: i32, %arg1: i32) -> (i32, i32, i32) {
    %c0_i32 = arith.constant 0 : i32
    %c0_i32_0 = arith.constant 0 : i32
    %c0_i32_1 = arith.constant 0 : i32
    %c0_i32_2 = arith.constant 0 : i32
    return %c0_i32, %c0_i32_0, %c0_i32_1 : i32, i32, i32
  }
  func.func @transform_6(%arg0: i32, %arg1: i32) -> (i32, i32, i32) {
    %c0_i32 = arith.constant 0 : i32
    %c0_i32_0 = arith.constant 0 : i32
    return %arg0, %c0_i32, %arg1 : i32, i32, i32
  }
}

</mosaic_0001>

<llo_original>
// kernel: tpu_custom_call.1
$region0: #{tpu_custom_call.1}
  #allocation0 [shape = 'u32[]', space=smem, size = 0x4, offset = 0x4, fixed_abs, tag = 'smem constant byte address 0x4 - core index']
  #allocation1 [shape = 'u32[144,128]{1,0:T(1,128)}', space=vmem, size = 0x12000, scoped, tag = 'internal scratch']
  #allocation2 [shape = 'f32[8,128]{1,0:T(8,128)}', space=vmem, size = 0x1000, scoped, tag = 'scratch operand']
  #allocation3 [shape = 'f32[8,128]{1,0:T(8,128)}', space=vmem, size = 0x1000, scoped, tag = 'scratch operand']
  #allocation4 [shape = 's32[2]{0}', space=sflag, size = 0x8, scoped, tag = 'scratch operand']
  #allocation9 [shape = 's32[]', space=sflag, size = 0x4, offset = 0, fixed_abs, tag = 'sflag constant byte address 0x0 - dummy sync flag']
  #allocation10 [shape = 's32[]', space=sflag, size = 0x4, offset = 0, fixed_abs, tag = 'sflag constant byte address 0x0 - dummy sync flag']
  #allocation11 [shape = 'u32[]', space=smem, size = 0x4, offset = 0x44, fixed_abs, tag = 'smem constant byte address 0x44 - assertion arg 0']
  #allocation12 [shape = 'u32[]', space=smem, size = 0x4, offset = 0x48, fixed_abs, tag = 'smem constant byte address 0x48 - assertion arg 1']
  #allocation13 [shape = 's32[]', space=sflag, size = 0x4, offset = 0, fixed_abs, tag = 'sflag constant byte address 0x0 - dummy sync flag']
  #allocation14 [shape = 's32[]', space=sflag, size = 0x4, offset = 0, fixed_abs, tag = 'sflag constant byte address 0x0 - dummy sync flag']
  %s0 = inlined_call_operand.vmem [shape: f32[2,8,384], index: 0, kind: input, shape index: {}]
  %s1 = inlined_call_operand.hbm [shape: f32[2,8,384], index: 1, kind: input, shape index: {}]
  %s2 = inlined_call_operand.vmem [shape: bf16[3,8,24], index: 2, kind: input, shape index: {}]
  %s3 = inlined_call_operand.vmem [shape: f32[3,8,1], index: 3, kind: input, shape index: {}]
  %s4 = inlined_call_operand.hbm [shape: bf16[3,8,24], index: 4, kind: input, shape index: {}]
  %s5 = inlined_call_operand.vmem [shape: f32[3,8,1], index: 5, kind: input, shape index: {}]
  %s6 = inlined_call_operand.hbm [shape: f32[2,8,384], index: 6, kind: output, shape index: {}]
  %s7 = sld [smem:[#allocation0]]
  $region65: #{tpu_custom_call.1} parent=0
    _
  %s9 = ssub.s32 1, %s7
  %s10 = scalar_select 0, %s9, %s7
  $region1: #{tpu_custom_call.1} parent=0
    #allocation5 [shape = 'u8[6144]{0}', space=vmem, size = 0x1800, scoped, tag = 'input window, operand 4, single buffered']
    #allocation6 [shape = 's32[2]{0}', space=sflag, size = 0x8, scoped, tag = 'scoped memory for tpu_custom_call.1']
    #allocation7 [shape = 's32[2]{0}', space=sflag, size = 0x8, scoped, tag = 'scoped memory for tpu_custom_call.1']
    #allocation8 [shape = 'u8[8192]{0}', space=vmem, size = 0x2000, scoped, tag = 'output window, operand 0']
    %11 = vsyncpa [#allocation6], 0
    %12 = vsyncpa [#allocation7], 0
    %s13 = scalar_lea.sflag [#allocation7], 1
    %14 = vsyncpa %s13, 0
    loop: start=0, step=1, limit=8
    $region2: #{tpu_custom_call.1} parent=1 // loop_pre_header
      _
    $region3: #{tpu_custom_call.1} parent=1 // loop_header
      %s16 = sphi 0, %s20
      %p17 = scmp.ge.s32.totalorder %s16, 8
      %s23 = sphi 0, %s35
      %s24 = sphi 0, %s31
      %s25 = sphi 0, %s23
      %s26 = sphi 0, %s24
      %s27 = sphi 0, %s25
      %s28 = sphi 0, %s26
      %s40 = sphi 0, %s42
      %s43 = sphi 0, %s40
      %s44 = sphi 0, %s43
      %s60 = sphi 0, %s44
      %s64 = sphi 0, %s64
      %s66 = sphi 0, %s64
      %s67 = sphi 0, %s66
      %s81 = sphi 0, %s67
      %s85 = sphi 0, %s85
      %s87 = sphi 0, %s85
      %s88 = sphi 0, %s87
      %s102 = sphi 0, %s88
      %s106 = sphi 0, %s106
      %s108 = sphi 0, %s106
      %s109 = sphi 0, %s108
      %s123 = sphi 0, %s109
      %s127 = sphi 0, %s127
      %s129 = sphi 0, %s127
      %s130 = sphi 0, %s129
      %s144 = sphi 0, %s130
      %s152 = sphi 0, %s154
      %s155 = sphi 0, %s152
      %s156 = sphi 0, %s155
      %s172 = sphi 0, %s156
    $region4: #{tpu_custom_call.1} parent=1 // loop_header_branch
      %19 = sbr.rel (%p17) target = $region8
    $region5: #{tpu_custom_call.1} parent=1 // loop_body
      %s21 = ssub.s32 %s16, 1
      %s22 = ssub.s32 %s16, 2
      %s29 = sadd.s32 1, %s24
      %p30 = scmp.ge.s32.totalorder %s29, 3
      %s31 = scalar_select %p30, 0, %s29
      %s32 = sadd.s32 1, %s23
      %s33 = scalar_select %p30, %s32, %s23
      %p34 = scmp.ge.s32.totalorder %s33, 2
      %s35 = scalar_select %p34, 0, %s33
      %s36 = ssub.s32 %s23, %s35
      %s37 = ssub.s32 %s24, %s31
      %s38 = sor.u32 %s36, %s37
      %p39 = scmp.eq.s32.totalorder %s38, 0
      %s41 = sadd.s32 %s40, 1
      %s42 = scalar_select %p39, %s40, %s41
      %p45 = pneg %p39
      %p46 = scmp.eq.s32.totalorder %s16, 5
      %p47 = por %p45, %p46
      %p48 = scmp.ne.s32.totalorder %s40, %s43
      %p49 = scmp.eq.s32.totalorder %s16, 0
      %p50 = por %p48, %p49
      %p51 = scmp.ne.s32.totalorder %s40, %s43
      %p52 = scmp.eq.s32.totalorder %s21, 5
      %p53 = por %p51, %p52
      %p54 = scmp.ne.s32.totalorder %s43, %s44
      %p55 = scmp.eq.s32.totalorder %s21, 0
      %p56 = por %p54, %p55
      %p57 = scmp.ne.s32.totalorder %s43, %s44
      %p58 = scmp.eq.s32.totalorder %s22, 5
      %p59 = por %p57, %p58
      %p61 = scmp.ne.s32.totalorder %s44, %s60
      %p62 = scmp.eq.s32.totalorder %s22, 0
      %p63 = por %p61, %p62
      %s65 = sadd.s32 %s64, 1
      %p68 = scmp.eq.s32.totalorder %s16, 5
      %p69 = scmp.ne.s32.totalorder %s64, %s66
      %p70 = scmp.eq.s32.totalorder %s16, 0
      %p71 = por %p69, %p70
      %p72 = scmp.ne.s32.totalorder %s64, %s66
      %p73 = scmp.eq.s32.totalorder %s21, 5
      %p74 = por %p72, %p73
      %p75 = scmp.ne.s32.totalorder %s66, %s67
      %p76 = scmp.eq.s32.totalorder %s21, 0
      %p77 = por %p75, %p76
      %p78 = scmp.ne.s32.totalorder %s66, %s67
      %p79 = scmp.eq.s32.totalorder %s22, 5
      %p80 = por %p78, %p79
      %p82 = scmp.ne.s32.totalorder %s67, %s81
      %p83 = scmp.eq.s32.totalorder %s22, 0
      %p84 = por %p82, %p83
      %s86 = sadd.s32 %s85, 1
      %p89 = scmp.eq.s32.totalorder %s16, 5
      %p90 = scmp.ne.s32.totalorder %s85, %s87
      %p91 = scmp.eq.s32.totalorder %s16, 0
      %p92 = por %p90, %p91
      %p93 = scmp.ne.s32.totalorder %s85, %s87
      %p94 = scmp.eq.s32.totalorder %s21, 5
      %p95 = por %p93, %p94
      %p96 = scmp.ne.s32.totalorder %s87, %s88
      %p97 = scmp.eq.s32.totalorder %s21, 0
      %p98 = por %p96, %p97
      %p99 = scmp.ne.s32.totalorder %s87, %s88
      %p100 = scmp.eq.s32.totalorder %s22, 5
      %p101 = por %p99, %p100
      %p103 = scmp.ne.s32.totalorder %s88, %s102
      %p104 = scmp.eq.s32.totalorder %s22, 0
      %p105 = por %p103, %p104
      %s107 = sadd.s32 %s106, 1
      %p110 = scmp.eq.s32.totalorder %s16, 5
      %p111 = scmp.ne.s32.totalorder %s106, %s108
      %p112 = scmp.eq.s32.totalorder %s16, 0
      %p113 = por %p111, %p112
      %p114 = scmp.ne.s32.totalorder %s106, %s108
      %p115 = scmp.eq.s32.totalorder %s21, 5
      %p116 = por %p114, %p115
      %p117 = scmp.ne.s32.totalorder %s108, %s109
      %p118 = scmp.eq.s32.totalorder %s21, 0
      %p119 = por %p117, %p118
      %p120 = scmp.ne.s32.totalorder %s108, %s109
      %p121 = scmp.eq.s32.totalorder %s22, 5
      %p122 = por %p120, %p121
      %p124 = scmp.ne.s32.totalorder %s109, %s123
      %p125 = scmp.eq.s32.totalorder %s22, 0
      %p126 = por %p124, %p125
      %s128 = sadd.s32 %s127, 1
      %p131 = scmp.eq.s32.totalorder %s16, 5
      %p132 = scmp.ne.s32.totalorder %s127, %s129
      %p133 = scmp.eq.s32.totalorder %s16, 0
      %p134 = por %p132, %p133
      %p135 = scmp.ne.s32.totalorder %s127, %s129
      %p136 = scmp.eq.s32.totalorder %s21, 5
      %p137 = por %p135, %p136
      %p138 = scmp.ne.s32.totalorder %s129, %s130
      %p139 = scmp.eq.s32.totalorder %s21, 0
      %p140 = por %p138, %p139
      %p141 = scmp.ne.s32.totalorder %s129, %s130
      %p142 = scmp.eq.s32.totalorder %s22, 5
      %p143 = por %p141, %p142
      %p145 = scmp.ne.s32.totalorder %s130, %s144
      %p146 = scmp.eq.s32.totalorder %s22, 0
      %p147 = por %p145, %p146
      %s148 = ssub.s32 %s23, %s35
      %s149 = ssub.s32 %s24, %s31
      %s150 = sor.u32 %s148, %s149
      %p151 = scmp.eq.s32.totalorder %s150, 0
      %s153 = sadd.s32 %s152, 1
      %s154 = scalar_select %p151, %s152, %s153
      %p157 = pneg %p151
      %p158 = scmp.eq.s32.totalorder %s16, 5
      %p159 = por %p157, %p158
      %p160 = scmp.ne.s32.totalorder %s152, %s155
      %p161 = scmp.eq.s32.totalorder %s16, 0
      %p162 = por %p160, %p161
      %p163 = scmp.ne.s32.totalorder %s152, %s155
      %p164 = scmp.eq.s32.totalorder %s21, 5
      %p165 = por %p163, %p164
      %p166 = scmp.ne.s32.totalorder %s155, %s156
      %p167 = scmp.eq.s32.totalorder %s21, 0
      %p168 = por %p166, %p167
      %p169 = scmp.ne.s32.totalorder %s155, %s156
      %p170 = scmp.eq.s32.totalorder %s22, 5
      %p171 = por %p169, %p170
      %p173 = scmp.ne.s32.totalorder %s156, %s172
      %p174 = scmp.eq.s32.totalorder %s22, 0
      %p175 = por %p173, %p174
      %p176 = scmp.le.s32.totalorder 1, %s16
      %p177 = scmp.lt.s32.totalorder %s16, 7
      %p178 = pnand %p176, %p177
      %p179 = pneg %p178
      // Predicated region
      $region9: #{tpu_custom_call.1} parent=5 // pred_check
        _
      $region10: #{tpu_custom_call.1} parent=5 // pred_check_branch
        %181 = sbr.rel (%p178) target = $region12
      $region11: #{tpu_custom_call.1} parent=5 // pred_region
        %s182 = ssub.s32 %s16, 1
        // Predicated region
        $region13: #{tpu_custom_call.1} parent=11 // pred_check
          %p183 = pneg %p77
        $region14: #{tpu_custom_call.1} parent=11 // pred_check_branch
          %185 = sbr.rel (%p183) target = $region16
        $region15: #{tpu_custom_call.1} parent=11 // pred_region
          _
        $region16: #{tpu_custom_call.1} parent=11 // pred_fallthru
          _
        // Predicated region
        $region17: #{tpu_custom_call.1} parent=11 // pred_check
          %p186 = pneg %p98
        $region18: #{tpu_custom_call.1} parent=11 // pred_check_branch
          %188 = sbr.rel (%p186) target = $region20
        $region19: #{tpu_custom_call.1} parent=11 // pred_region
          _
        $region20: #{tpu_custom_call.1} parent=11 // pred_fallthru
          _
        // Predicated region
        $region21: #{tpu_custom_call.1} parent=11 // pred_check
          %p189 = pneg %p119
        $region22: #{tpu_custom_call.1} parent=11 // pred_check_branch
          %191 = sbr.rel (%p189) target = $region24
        $region23: #{tpu_custom_call.1} parent=11 // pred_region
          %s193 = ssub.s32 192, 192
          %194 = vsyncadd [#allocation6], %s193
          %s195 = sshll.u32 [#allocation5], 4
          %s196 = int_to_ptr.vmem [resolvable:$true] %s195
          %201 = dma.hbm_to_vmem [thread:$0]  %s4, 192, %s196, [#allocation6], 64, 64, 4
        $region24: #{tpu_custom_call.1} parent=11 // pred_fallthru
          _
        // Predicated region
        $region25: #{tpu_custom_call.1} parent=11 // pred_check
          %p202 = pneg %p140
        $region26: #{tpu_custom_call.1} parent=11 // pred_check_branch
          %204 = sbr.rel (%p202) target = $region28
        $region27: #{tpu_custom_call.1} parent=11 // pred_region
          _
        $region28: #{tpu_custom_call.1} parent=11 // pred_fallthru
          _
      $region12: #{tpu_custom_call.1} parent=5 // pred_fallthru
        _
      %p205 = scmp.lt.s32.totalorder %s16, 6
      // Predicated region
      $region29: #{tpu_custom_call.1} parent=5 // pred_check
        %p206 = pneg %p205
      $region30: #{tpu_custom_call.1} parent=5 // pred_check_branch
        %208 = sbr.rel (%p206) target = $region32
      $region31: #{tpu_custom_call.1} parent=5 // pred_region
        // Predicated region
        $region33: #{tpu_custom_call.1} parent=31 // pred_check
          %p209 = pneg %p50
        $region34: #{tpu_custom_call.1} parent=31 // pred_check_branch
          %211 = sbr.rel (%p209) target = $region36
        $region35: #{tpu_custom_call.1} parent=31 // pred_region
          %p212 = scmp.lt.s32.totalorder %s23, 1
          %s213 = scalar_select %p212, %s23, 1
          %p214 = scmp.lt.s32.totalorder %s24, 2
          %s215 = scalar_select %p214, %s24, 2
          %s216 = smul.addr %s213, 3
          %s217 = sadd.s32 %s215, %s216
          %s218 = smul.addr %s217, 8
          %s219 = scalar_lea.vmem %s0, %s218
        $region36: #{tpu_custom_call.1} parent=31 // pred_fallthru
          _
      $region32: #{tpu_custom_call.1} parent=5 // pred_fallthru
        _
      %p220 = scmp.le.s32.totalorder 1, %s16
      %p221 = scmp.lt.s32.totalorder %s16, 7
      %p222 = pnand %p220, %p221
      %p223 = pneg %p222
      // Predicated region
      $region37: #{tpu_custom_call.1} parent=5 // pred_check
        _
      $region38: #{tpu_custom_call.1} parent=5 // pred_check_branch
        %225 = sbr.rel (%p222) target = $region40
      $region39: #{tpu_custom_call.1} parent=5 // pred_region
        %s226 = ssub.s32 %s16, 1
        // Predicated region
        $region41: #{tpu_custom_call.1} parent=39 // pred_check
          %p227 = pneg %p119
        $region42: #{tpu_custom_call.1} parent=39 // pred_check_branch
          %229 = sbr.rel (%p227) target = $region44
        $region43: #{tpu_custom_call.1} parent=39 // pred_region
          %230 = dma.done [#allocation6], 192
        $region44: #{tpu_custom_call.1} parent=39 // pred_fallthru
          _
        %p231 = scmp.lt.s32.totalorder %s25, 1
        %s232 = scalar_select %p231, %s25, 1
        %p233 = scmp.lt.s32.totalorder %s26, 2
        %s234 = scalar_select %p233, %s26, 2
        %s235 = smul.addr %s232, 3
        %s236 = sadd.s32 %s234, %s235
        %s237 = smul.addr %s236, 8
        %s238 = scalar_lea.vmem %s0, %s237
        %p239 = pneg %p56
        %p240 = pneg %p53
        %p241 = pneg %p77
        %p242 = pneg %p74
        %p243 = pneg %p98
        %p244 = pneg %p95
        %p245 = pneg %p119
        %p246 = pneg %p116
        %p247 = pneg %p140
        %p248 = pneg %p137
        %p249 = pneg %p168
        %p250 = pneg %p165
        %s251 = sand.u32 %s155, 1
        %s252 = scalar_lea.sflag [#allocation7], %s251
        %s253 = sand.u32 %s155, 1
        %s254 = smul.addr %s253, 8
        %s255 = scalar_lea.vmem [#allocation8], %s254
        %p256 = scmp.lt.s32.totalorder %s25, 1
        %s257 = scalar_select %p256, %s25, 1
        %p258 = scmp.lt.s32.totalorder %s26, 2
        %s259 = scalar_select %p258, %s26, 2
        %s260 = smul.addr %s257, 3
        %s261 = sadd.s32 %s259, %s260
        %s262 = smul.addr %s261, 8
        %s263 = scalar_lea.vmem %s0, %s262
        %s265 = smul.u32 %s26, 128
        %s266 = ssub.s32 %s265, 128
        %p267 = scmp.gt.s32.totalorder %s266, 0
        %s268 = scalar_select %p267, %s266, 0
        %s269 = sadd.s32 %s26, 1
        %s270 = smul.u32 %s269, 128
        %p271 = scmp.lt.s32.totalorder %s270, 256
        %s272 = scalar_select %p271, %s270, 256
        %s273 = sshra.s32 %s268, 7
        %s274 = sand.u32 %s268, 127
        %s275 = smul.u32 %s25, 3
        %s276 = sadd.s32 %s273, %s275
        %s277 = smul.addr %s276, 128
        %s278 = scalar_lea.hbm %s1, %s277
        // Predicated region
        $region45: #{tpu_custom_call.1} parent=39 // pred_check
          _
        $region46: #{tpu_custom_call.1} parent=39 // pred_check_branch
          %280 = sbr.rel target = $region48
        $region47: #{tpu_custom_call.1} parent=39 // pred_region
          %281 = sst [smem:[#allocation11]] [#allocation10]
          %282 = sst [smem:[#allocation12]] [#allocation9]
        $region48: #{tpu_custom_call.1} parent=39 // pred_fallthru
          _
        %284 = shalt.err (0)
        %s286 = sshll.u32 [#allocation2], 4
        %s287 = int_to_ptr.vmem [resolvable:$true] %s286
        %289 = dma.hbm_to_vmem [thread:$0]  %s278, 128, %s287, [#allocation4]
        %s290 = sshra.s32 %s272, 7
        %s291 = sand.u32 %s272, 127
        %s292 = sadd.s32 %s290, %s275
        %s293 = smul.addr %s292, 128
        %s294 = scalar_lea.hbm %s1, %s293
        %s295 = scalar_lea.sflag [#allocation4], 1
        // Predicated region
        $region49: #{tpu_custom_call.1} parent=39 // pred_check
          _
        $region50: #{tpu_custom_call.1} parent=39 // pred_check_branch
          %297 = sbr.rel target = $region52
        $region51: #{tpu_custom_call.1} parent=39 // pred_region
          %298 = sst [smem:[#allocation11]] [#allocation14]
          %299 = sst [smem:[#allocation12]] [#allocation13]
        $region52: #{tpu_custom_call.1} parent=39 // pred_fallthru
          _
        %301 = shalt.err (0)
        %s303 = sshll.u32 [#allocation3], 4
        %s304 = int_to_ptr.vmem [resolvable:$true] %s303
        %306 = dma.hbm_to_vmem [thread:$0]  %s294, 128, %s304, %s295
        %v307 = vlaneseq
        %v308 = vand.u32 %v307, 127
        %v309 = vadd.s32 %v308, 128
        %v310 = vadd.s32 %v308, 256
        %v311 = vstv %s266
        %v312 = vadd.s32 %v308, %v311
        %v313 = vadd.s32 %v309, %v311
        %v314 = vadd.s32 %v310, %v311
        %vm315 = vcmp.ge.s32.totalorder %v312, 0
        %vm316 = vcmp.ge.s32.totalorder %v313, 0
        %vm317 = vcmp.ge.s32.totalorder %v314, 0
        %vm318 = vcmp.lt.s32.totalorder %v312, 320
        %vm319 = vcmp.lt.s32.totalorder %v313, 320
        %vm320 = vcmp.lt.s32.totalorder %v314, 320
        %vm321 = vmand %vm315, %vm318
        %vm322 = vmand %vm316, %vm319
        %vm323 = vmand %vm317, %vm320
        %v324 = vsel %vm321, 1, 0
        %v325 = vsel %vm322, 1, 0
        %v326 = vsel %vm323, 1, 0
        %v327 = vcvt.s32.f32 %v324
        %v328 = vcvt.s32.f32 %v325
        %v329 = vcvt.s32.f32 %v326
        %s330 = smul.u32 8, 1
        %s331 = smul.u32 %s330, 1
        %s332 = sshll.u32 %s331, 4
        %333 = dma.done [#allocation4], %s332
        %s334 = sshll.u32 %s331, 4
        %335 = dma.done %s295, %s334
        %v336 = vld [vmem:[#allocation2] sm:$0xff]
        %v337 = vld [vmem:[%s263] sm:$0xff]
        %v338 = vld [vmem:[#allocation3] sm:$0xff]
        %vm339 = vcmp.ge.f32.partialorder %v336, 0.0
        %vm340 = vcmp.ge.f32.partialorder %v337, 0.0
        %vm341 = vcmp.ge.f32.partialorder %v338, 0.0
        %v342 = vmul.f32 %v336, 0.1
        %v343 = vmul.f32 %v337, 0.1
        %v344 = vmul.f32 %v338, 0.1
        %v345 = vsel %vm339, %v336, %v342
        %v346 = vsel %vm340, %v337, %v343
        %v347 = vsel %vm341, %v338, %v344
        %v348 = vld [vmem:[%s2] sm:$0xf]
        %v349 = vld [vmem:[%s3] sm:$0xff]
        %v350 = vmul.f32 %v345, %v327
        %v351 = vmul.f32 %v346, %v328
        %v352 = vmul.f32 %v347, %v329
        %353 = vrot.lane.b32.xlu0 %v350, 1
        %v354 = vpop.permute.xlu0 %353
        %355 = vrot.lane.b32.xlu0 %v351, 1
        %v356 = vpop.permute.xlu0 %355
        %357 = vrot.lane.b32.xlu0 %v352, 1
        %v358 = vpop.permute.xlu0 %357
        %vm359 = vcmp.lt.s32.totalorder %v308, 1
        %v360 = vsel %vm359, %v356, %v358
        %v361 = vsel %vm359, %v354, %v356
        %v362 = vsel %vm359, %v358, %v354
        %363 = vrot.lane.b32.xlu0 %v350, 127
        %v364 = vpop.permute.xlu0 %363
        %365 = vrot.lane.b32.xlu0 %v351, 127
        %v366 = vpop.permute.xlu0 %365
        %367 = vrot.lane.b32.xlu0 %v352, 127
        %v368 = vpop.permute.xlu0 %367
        %vm369 = vcmp.lt.s32.totalorder %v308, 127
        %v370 = vsel %vm369, %v366, %v368
        %v371 = vsel %vm369, %v364, %v366
        %v372 = vsel %vm369, %v368, %v364
        %v373 = vpack.c.bf16 %v350, %v362
        %v374 = vpack.c.bf16 %v351, %v361
        %v375 = vpack.c.bf16 %v352, %v360
        %v376 = vpack.c.bf16 %v371, %v371
        %v377 = vpack.c.bf16 %v370, %v370
        %v378 = vpack.c.bf16 %v372, %v372
        %380 = vset.pattern.permute.xlu0 0
        %381 = vperm.xlu0 %380, %v349
        %v382 = vpop.permute.xlu0 %381
        %vm384 = vcmask 195584
        %v386 = vsel %vm384, %v348, 0
        %vm388 = vcmask 1043456
        %v390 = vsel %vm388, %v376, 0
        %v393 = vsel %vm388, %v377, 0
        %v396 = vsel %vm388, %v378, 0
        %398 = vmatprep.subr.bf16.mxu0 %v374
        %399 = vmatpush1.bf16.msra.mxu0 %v373
        %400 = vmatprep.subr.bf16.mxu0 %v393
        %401 = vmatpush1.bf16.msra.mxu0 %v390
        %402 = vmatprep.subr.bf16.mxu0 0
        %403 = vmatpush1.bf16.msra.mxu0 0
        %404 = vmatprep.subr.bf16.mxu0 0
        %405 = vmatpush1.bf16.msra.mxu0 0
        %406 = vmatprep.subr.bf16.mxu0 0
        %407 = vmatpush1.bf16.msra.mxu0 0
        %408 = vmatprep.subr.bf16.mxu0 0
        %409 = vmatpush1.bf16.msra.mxu0 0
        %410 = vmatprep.subr.bf16.mxu0 0
        %411 = vmatpush1.bf16.msra.mxu0 0
        %412 = vmatprep.subr.bf16.mxu0 0
        %413 = vmatpush1.bf16.msra.mxu0 0
        %414 = vmatprep.subr.bf16.mxu0 0
        %415 = vmatpush1.bf16.msra.mxu0 0
        %416 = vmatprep.subr.bf16.mxu0 0
        %417 = vmatpush1.bf16.msra.mxu0 0
        %418 = vmatprep.subr.bf16.mxu0 0
        %419 = vmatpush1.bf16.msra.mxu0 0
        %420 = vmatprep.subr.bf16.mxu0 0
        %421 = vmatpush1.bf16.msra.mxu0 0
        %422 = vmatprep.subr.bf16.mxu0 0
        %423 = vmatpush1.bf16.msra.mxu0 0
        %424 = vmatprep.subr.bf16.mxu0 0
        %425 = vmatpush1.bf16.msra.mxu0 0
        %426 = vmatprep.subr.bf16.mxu0 0
        %427 = vmatpush1.bf16.msra.mxu0 0
        %428 = vmatprep.subr.bf16.mxu0 0
        %429 = vmatpush1.bf16.msra.mxu0 0
        %430 = vmatprep.mubr.bf16.mxu0 0
        %431 = vmatmul.mubr.bf16.gmra.mrb[0].mxu0 %v386
        %v432 = vpop.f32.mrb[0].mxu0
        %v433 = vadd.f32 %v382, %v432
        %v434 = vpop.f32.mrb[0].mxu0
        %v435 = vadd.f32 %v382, %v434
        %v436 = vpop.f32.mrb[0].mxu0
        %v437 = vpop.f32.mrb[0].mxu0
        %438 = vdwg.mxu0
        %439 = vmatprep.subr.bf16.mxu0 0
        %440 = vmatpush1.bf16.msra.mxu0 %v375
        %441 = vmatprep.subr.bf16.mxu0 0
        %442 = vmatpush1.bf16.msra.mxu0 %v396
        %443 = vmatprep.subr.bf16.mxu0 0
        %444 = vmatpush1.bf16.msra.mxu0 0
        %445 = vmatprep.subr.bf16.mxu0 0
        %446 = vmatpush1.bf16.msra.mxu0 0
        %447 = vmatprep.subr.bf16.mxu0 0
        %448 = vmatpush1.bf16.msra.mxu0 0
        %449 = vmatprep.subr.bf16.mxu0 0
        %450 = vmatpush1.bf16.msra.mxu0 0
        %451 = vmatprep.subr.bf16.mxu0 0
        %452 = vmatpush1.bf16.msra.mxu0 0
        %453 = vmatprep.subr.bf16.mxu0 0
        %454 = vmatpush1.bf16.msra.mxu0 0
        %455 = vmatprep.subr.bf16.mxu0 0
        %456 = vmatpush1.bf16.msra.mxu0 0
        %457 = vmatprep.subr.bf16.mxu0 0
        %458 = vmatpush1.bf16.msra.mxu0 0
        %459 = vmatprep.subr.bf16.mxu0 0
        %460 = vmatpush1.bf16.msra.mxu0 0
        %461 = vmatprep.subr.bf16.mxu0 0
        %462 = vmatpush1.bf16.msra.mxu0 0
        %463 = vmatprep.subr.bf16.mxu0 0
        %464 = vmatpush1.bf16.msra.mxu0 0
        %465 = vmatprep.subr.bf16.mxu0 0
        %466 = vmatpush1.bf16.msra.mxu0 0
        %467 = vmatprep.subr.bf16.mxu0 0
        %468 = vmatpush1.bf16.msra.mxu0 0
        %469 = vmatprep.subr.bf16.mxu0 0
        %470 = vmatpush1.bf16.msra.mxu0 0
        %471 = vmatprep.mubr.bf16.mxu0 0
        %472 = vmatmul.mubr.bf16.gmra.mrb[0].mxu0 %v386
        %v473 = vpop.f32.mrb[0].mxu0
        %v474 = vadd.f32 %v382, %v473
        %v475 = vpop.f32.mrb[0].mxu0
        %v476 = vpop.f32.mrb[0].mxu0
        %v477 = vpop.f32.mrb[0].mxu0
        %478 = vdwg.mxu0
        %vm479 = vcmp.ge.f32.partialorder %v433, 0.0
        %vm480 = vcmp.ge.f32.partialorder %v435, 0.0
        %vm481 = vcmp.ge.f32.partialorder %v474, 0.0
        %v482 = vmul.f32 %v433, 0.1
        %v483 = vmul.f32 %v435, 0.1
        %v484 = vmul.f32 %v474, 0.1
        %v485 = vsel %vm479, %v433, %v482
        %v486 = vsel %vm480, %v435, %v483
        %v487 = vsel %vm481, %v474, %v484
        %v488 = vld [vmem:[#allocation5] sm:$0xf]
        %v489 = vld [vmem:[%s5] sm:$0xff]
        %v490 = vmul.f32 %v485, %v327
        %v491 = vmul.f32 %v486, %v328
        %v492 = vmul.f32 %v487, %v329
        %493 = vrot.lane.b32.xlu0 %v490, 1
        %v494 = vpop.permute.xlu0 %493
        %495 = vrot.lane.b32.xlu0 %v491, 1
        %v496 = vpop.permute.xlu0 %495
        %497 = vrot.lane.b32.xlu0 %v492, 1
        %v498 = vpop.permute.xlu0 %497
        %v499 = vsel %vm359, %v496, %v498
        %v500 = vsel %vm359, %v494, %v496
        %v501 = vsel %vm359, %v498, %v494
        %502 = vrot.lane.b32.xlu0 %v490, 127
        %v503 = vpop.permute.xlu0 %502
        %504 = vrot.lane.b32.xlu0 %v491, 127
        %v505 = vpop.permute.xlu0 %504
        %506 = vrot.lane.b32.xlu0 %v492, 127
        %v507 = vpop.permute.xlu0 %506
        %v508 = vsel %vm369, %v505, %v507
        %v509 = vsel %vm369, %v503, %v505
        %v510 = vsel %vm369, %v507, %v503
        %v511 = vpack.c.bf16 %v490, %v501
        %v512 = vpack.c.bf16 %v491, %v500
        %v513 = vpack.c.bf16 %v492, %v499
        %v514 = vpack.c.bf16 %v509, %v509
        %v515 = vpack.c.bf16 %v508, %v508
        %v516 = vpack.c.bf16 %v510, %v510
        %518 = vset.pattern.permute.xlu0 0
        %519 = vperm.xlu0 %518, %v489
        %v520 = vpop.permute.xlu0 %519
        %v523 = vsel %vm384, %v488, 0
        %v526 = vsel %vm388, %v514, 0
        %v529 = vsel %vm388, %v515, 0
        %v532 = vsel %vm388, %v516, 0
        %534 = vmatprep.subr.bf16.mxu0 %v512
        %535 = vmatpush1.bf16.msra.mxu0 %v511
        %536 = vmatprep.subr.bf16.mxu0 %v529
        %537 = vmatpush1.bf16.msra.mxu0 %v526
        %538 = vmatprep.subr.bf16.mxu0 0
        %539 = vmatpush1.bf16.msra.mxu0 0
        %540 = vmatprep.subr.bf16.mxu0 0
        %541 = vmatpush1.bf16.msra.mxu0 0
        %542 = vmatprep.subr.bf16.mxu0 0
        %543 = vmatpush1.bf16.msra.mxu0 0
        %544 = vmatprep.subr.bf16.mxu0 0
        %545 = vmatpush1.bf16.msra.mxu0 0
        %546 = vmatprep.subr.bf16.mxu0 0
        %547 = vmatpush1.bf16.msra.mxu0 0
        %548 = vmatprep.subr.bf16.mxu0 0
        %549 = vmatpush1.bf16.msra.mxu0 0
        %550 = vmatprep.subr.bf16.mxu0 0
        %551 = vmatpush1.bf16.msra.mxu0 0
        %552 = vmatprep.subr.bf16.mxu0 0
        %553 = vmatpush1.bf16.msra.mxu0 0
        %554 = vmatprep.subr.bf16.mxu0 0
        %555 = vmatpush1.bf16.msra.mxu0 0
        %556 = vmatprep.subr.bf16.mxu0 0
        %557 = vmatpush1.bf16.msra.mxu0 0
        %558 = vmatprep.subr.bf16.mxu0 0
        %559 = vmatpush1.bf16.msra.mxu0 0
        %560 = vmatprep.subr.bf16.mxu0 0
        %561 = vmatpush1.bf16.msra.mxu0 0
        %562 = vmatprep.subr.bf16.mxu0 0
        %563 = vmatpush1.bf16.msra.mxu0 0
        %564 = vmatprep.subr.bf16.mxu0 0
        %565 = vmatpush1.bf16.msra.mxu0 0
        %566 = vmatprep.mubr.bf16.mxu0 0
        %567 = vmatmul.mubr.bf16.gmra.mrb[0].mxu0 %v523
        %v568 = vpop.f32.mrb[0].mxu0
        %v569 = vadd.f32 %v520, %v568
        %v570 = vpop.f32.mrb[0].mxu0
        %v571 = vadd.f32 %v520, %v570
        %v572 = vpop.f32.mrb[0].mxu0
        %v573 = vpop.f32.mrb[0].mxu0
        %574 = vdwg.mxu0
        %575 = vmatprep.subr.bf16.mxu0 0
        %576 = vmatpush1.bf16.msra.mxu0 %v513
        %577 = vmatprep.subr.bf16.mxu0 0
        %578 = vmatpush1.bf16.msra.mxu0 %v532
        %579 = vmatprep.subr.bf16.mxu0 0
        %580 = vmatpush1.bf16.msra.mxu0 0
        %581 = vmatprep.subr.bf16.mxu0 0
        %582 = vmatpush1.bf16.msra.mxu0 0
        %583 = vmatprep.subr.bf16.mxu0 0
        %584 = vmatpush1.bf16.msra.mxu0 0
        %585 = vmatprep.subr.bf16.mxu0 0
        %586 = vmatpush1.bf16.msra.mxu0 0
        %587 = vmatprep.subr.bf16.mxu0 0
        %588 = vmatpush1.bf16.msra.mxu0 0
        %589 = vmatprep.subr.bf16.mxu0 0
        %590 = vmatpush1.bf16.msra.mxu0 0
        %591 = vmatprep.subr.bf16.mxu0 0
        %592 = vmatpush1.bf16.msra.mxu0 0
        %593 = vmatprep.subr.bf16.mxu0 0
        %594 = vmatpush1.bf16.msra.mxu0 0
        %595 = vmatprep.subr.bf16.mxu0 0
        %596 = vmatpush1.bf16.msra.mxu0 0
        %597 = vmatprep.subr.bf16.mxu0 0
        %598 = vmatpush1.bf16.msra.mxu0 0
        %599 = vmatprep.subr.bf16.mxu0 0
        %600 = vmatpush1.bf16.msra.mxu0 0
        %601 = vmatprep.subr.bf16.mxu0 0
        %602 = vmatpush1.bf16.msra.mxu0 0
        %603 = vmatprep.subr.bf16.mxu0 0
        %604 = vmatpush1.bf16.msra.mxu0 0
        %605 = vmatprep.subr.bf16.mxu0 0
        %606 = vmatpush1.bf16.msra.mxu0 0
        %607 = vmatprep.mubr.bf16.mxu0 0
        %608 = vmatmul.mubr.bf16.gmra.mrb[0].mxu0 %v523
        %v609 = vpop.f32.mrb[0].mxu0
        %v610 = vadd.f32 %v520, %v609
        %v611 = vpop.f32.mrb[0].mxu0
        %v612 = vpop.f32.mrb[0].mxu0
        %v613 = vpop.f32.mrb[0].mxu0
        %614 = vdwg.mxu0
        %v615 = vadd.f32 %v569, %v336
        %v616 = vadd.f32 %v571, %v337
        %v617 = vadd.f32 %v610, %v338
        %vm618 = vcmp.ge.f32.partialorder %v615, 0.0
        %vm619 = vcmp.ge.f32.partialorder %v616, 0.0
        %vm620 = vcmp.ge.f32.partialorder %v617, 0.0
        %v621 = vmul.f32 %v615, 0.1
        %v622 = vmul.f32 %v616, 0.1
        %v623 = vmul.f32 %v617, 0.1
        %v624 = vsel %vm618, %v615, %v621
        %v625 = vsel %vm619, %v616, %v622
        %v626 = vsel %vm620, %v617, %v623
        %s627 = scalar_lea.vmem %s2, 4
        %v628 = vld [vmem:[%s627] sm:$0xf]
        %s629 = scalar_lea.vmem %s3, 8
        %v630 = vld [vmem:[%s629] sm:$0xff]
        %v631 = vmul.f32 %v624, %v327
        %v632 = vmul.f32 %v625, %v328
        %v633 = vmul.f32 %v626, %v329
        %634 = vrot.lane.b32.xlu0 %v631, 3
        %v635 = vpop.permute.xlu0 %634
        %636 = vrot.lane.b32.xlu0 %v632, 3
        %v637 = vpop.permute.xlu0 %636
        %638 = vrot.lane.b32.xlu0 %v633, 3
        %v639 = vpop.permute.xlu0 %638
        %vm640 = vcmp.lt.s32.totalorder %v308, 3
        %v641 = vsel %vm640, %v637, %v639
        %v642 = vsel %vm640, %v635, %v637
        %v643 = vsel %vm640, %v639, %v635
        %644 = vrot.lane.b32.xlu0 %v631, 125
        %v645 = vpop.permute.xlu0 %644
        %646 = vrot.lane.b32.xlu0 %v632, 125
        %v647 = vpop.permute.xlu0 %646
        %648 = vrot.lane.b32.xlu0 %v633, 125
        %v649 = vpop.permute.xlu0 %648
        %vm650 = vcmp.lt.s32.totalorder %v308, 125
        %v651 = vsel %vm650, %v647, %v649
        %v652 = vsel %vm650, %v645, %v647
        %v653 = vsel %vm650, %v649, %v645
        %v654 = vpack.c.bf16 %v631, %v643
        %v655 = vpack.c.bf16 %v632, %v642
        %v656 = vpack.c.bf16 %v633, %v641
        %v657 = vpack.c.bf16 %v652, %v652
        %v658 = vpack.c.bf16 %v651, %v651
        %v659 = vpack.c.bf16 %v653, %v653
        %661 = vset.pattern.permute.xlu0 0
        %662 = vperm.xlu0 %661, %v630
        %v663 = vpop.permute.xlu0 %662
        %v666 = vsel %vm384, %v628, 0
        %v669 = vsel %vm388, %v657, 0
        %v672 = vsel %vm388, %v658, 0
        %v675 = vsel %vm388, %v659, 0
        %677 = vmatprep.subr.bf16.mxu0 %v655
        %678 = vmatpush1.bf16.msra.mxu0 %v654
        %679 = vmatprep.subr.bf16.mxu0 %v672
        %680 = vmatpush1.bf16.msra.mxu0 %v669
        %681 = vmatprep.subr.bf16.mxu0 0
        %682 = vmatpush1.bf16.msra.mxu0 0
        %683 = vmatprep.subr.bf16.mxu0 0
        %684 = vmatpush1.bf16.msra.mxu0 0
        %685 = vmatprep.subr.bf16.mxu0 0
        %686 = vmatpush1.bf16.msra.mxu0 0
        %687 = vmatprep.subr.bf16.mxu0 0
        %688 = vmatpush1.bf16.msra.mxu0 0
        %689 = vmatprep.subr.bf16.mxu0 0
        %690 = vmatpush1.bf16.msra.mxu0 0
        %691 = vmatprep.subr.bf16.mxu0 0
        %692 = vmatpush1.bf16.msra.mxu0 0
        %693 = vmatprep.subr.bf16.mxu0 0
        %694 = vmatpush1.bf16.msra.mxu0 0
        %695 = vmatprep.subr.bf16.mxu0 0
        %696 = vmatpush1.bf16.msra.mxu0 0
        %697 = vmatprep.subr.bf16.mxu0 0
        %698 = vmatpush1.bf16.msra.mxu0 0
        %699 = vmatprep.subr.bf16.mxu0 0
        %700 = vmatpush1.bf16.msra.mxu0 0
        %701 = vmatprep.subr.bf16.mxu0 0
        %702 = vmatpush1.bf16.msra.mxu0 0
        %703 = vmatprep.subr.bf16.mxu0 0
        %704 = vmatpush1.bf16.msra.mxu0 0
        %705 = vmatprep.subr.bf16.mxu0 0
        %706 = vmatpush1.bf16.msra.mxu0 0
        %707 = vmatprep.subr.bf16.mxu0 0
        %708 = vmatpush1.bf16.msra.mxu0 0
        %709 = vmatprep.mubr.bf16.mxu0 0
        %710 = vmatmul.mubr.bf16.gmra.mrb[0].mxu0 %v666
        %v711 = vpop.f32.mrb[0].mxu0
        %v712 = vadd.f32 %v663, %v711
        %v713 = vpop.f32.mrb[0].mxu0
        %v714 = vadd.f32 %v663, %v713
        %v715 = vpop.f32.mrb[0].mxu0
        %v716 = vpop.f32.mrb[0].mxu0
        %717 = vdwg.mxu0
        %718 = vmatprep.subr.bf16.mxu0 0
        %719 = vmatpush1.bf16.msra.mxu0 %v656
        %720 = vmatprep.subr.bf16.mxu0 0
        %721 = vmatpush1.bf16.msra.mxu0 %v675
        %722 = vmatprep.subr.bf16.mxu0 0
        %723 = vmatpush1.bf16.msra.mxu0 0
        %724 = vmatprep.subr.bf16.mxu0 0
        %725 = vmatpush1.bf16.msra.mxu0 0
        %726 = vmatprep.subr.bf16.mxu0 0
        %727 = vmatpush1.bf16.msra.mxu0 0
        %728 = vmatprep.subr.bf16.mxu0 0
        %729 = vmatpush1.bf16.msra.mxu0 0
        %730 = vmatprep.subr.bf16.mxu0 0
        %731 = vmatpush1.bf16.msra.mxu0 0
        %732 = vmatprep.subr.bf16.mxu0 0
        %733 = vmatpush1.bf16.msra.mxu0 0
        %734 = vmatprep.subr.bf16.mxu0 0
        %735 = vmatpush1.bf16.msra.mxu0 0
        %736 = vmatprep.subr.bf16.mxu0 0
        %737 = vmatpush1.bf16.msra.mxu0 0
        %738 = vmatprep.subr.bf16.mxu0 0
        %739 = vmatpush1.bf16.msra.mxu0 0
        %740 = vmatprep.subr.bf16.mxu0 0
        %741 = vmatpush1.bf16.msra.mxu0 0
        %742 = vmatprep.subr.bf16.mxu0 0
        %743 = vmatpush1.bf16.msra.mxu0 0
        %744 = vmatprep.subr.bf16.mxu0 0
        %745 = vmatpush1.bf16.msra.mxu0 0
        %746 = vmatprep.subr.bf16.mxu0 0
        %747 = vmatpush1.bf16.msra.mxu0 0
        %748 = vmatprep.subr.bf16.mxu0 0
        %749 = vmatpush1.bf16.msra.mxu0 0
        %750 = vmatprep.mubr.bf16.mxu0 0
        %751 = vmatmul.mubr.bf16.gmra.mrb[0].mxu0 %v666
        %v752 = vpop.f32.mrb[0].mxu0
        %v753 = vadd.f32 %v663, %v752
        %v754 = vpop.f32.mrb[0].mxu0
        %v755 = vpop.f32.mrb[0].mxu0
        %v756 = vpop.f32.mrb[0].mxu0
        %757 = vdwg.mxu0
        %vm758 = vcmp.ge.f32.partialorder %v712, 0.0
        %vm759 = vcmp.ge.f32.partialorder %v714, 0.0
        %vm760 = vcmp.ge.f32.partialorder %v753, 0.0
        %v761 = vmul.f32 %v712, 0.1
        %v762 = vmul.f32 %v714, 0.1
        %v763 = vmul.f32 %v753, 0.1
        %v764 = vsel %vm758, %v712, %v761
        %v765 = vsel %vm759, %v714, %v762
        %v766 = vsel %vm760, %v753, %v763
        %s767 = scalar_lea.vmem [#allocation5], 4
        %v768 = vld [vmem:[%s767] sm:$0xf]
        %s769 = scalar_lea.vmem %s5, 8
        %v770 = vld [vmem:[%s769] sm:$0xff]
        %v771 = vmul.f32 %v764, %v327
        %v772 = vmul.f32 %v765, %v328
        %v773 = vmul.f32 %v766, %v329
        %774 = vrot.lane.b32.xlu0 %v771, 1
        %v775 = vpop.permute.xlu0 %774
        %776 = vrot.lane.b32.xlu0 %v772, 1
        %v777 = vpop.permute.xlu0 %776
        %778 = vrot.lane.b32.xlu0 %v773, 1
        %v779 = vpop.permute.xlu0 %778
        %v780 = vsel %vm359, %v777, %v779
        %v781 = vsel %vm359, %v775, %v777
        %v782 = vsel %vm359, %v779, %v775
        %783 = vrot.lane.b32.xlu0 %v771, 127
        %v784 = vpop.permute.xlu0 %783
        %785 = vrot.lane.b32.xlu0 %v772, 127
        %v786 = vpop.permute.xlu0 %785
        %787 = vrot.lane.b32.xlu0 %v773, 127
        %v788 = vpop.permute.xlu0 %787
        %v789 = vsel %vm369, %v786, %v788
        %v790 = vsel %vm369, %v784, %v786
        %v791 = vsel %vm369, %v788, %v784
        %v792 = vpack.c.bf16 %v771, %v782
        %v793 = vpack.c.bf16 %v772, %v781
        %v794 = vpack.c.bf16 %v773, %v780
        %v795 = vpack.c.bf16 %v790, %v790
        %v796 = vpack.c.bf16 %v789, %v789
        %v797 = vpack.c.bf16 %v791, %v791
        %799 = vset.pattern.permute.xlu0 0
        %800 = vperm.xlu0 %799, %v770
        %v801 = vpop.permute.xlu0 %800
        %v804 = vsel %vm384, %v768, 0
        %v807 = vsel %vm388, %v795, 0
        %v810 = vsel %vm388, %v796, 0
        %v813 = vsel %vm388, %v797, 0
        %815 = vmatprep.subr.bf16.mxu0 %v793
        %816 = vmatpush1.bf16.msra.mxu0 %v792
        %817 = vmatprep.subr.bf16.mxu0 %v810
        %818 = vmatpush1.bf16.msra.mxu0 %v807
        %819 = vmatprep.subr.bf16.mxu0 0
        %820 = vmatpush1.bf16.msra.mxu0 0
        %821 = vmatprep.subr.bf16.mxu0 0
        %822 = vmatpush1.bf16.msra.mxu0 0
        %823 = vmatprep.subr.bf16.mxu0 0
        %824 = vmatpush1.bf16.msra.mxu0 0
        %825 = vmatprep.subr.bf16.mxu0 0
        %826 = vmatpush1.bf16.msra.mxu0 0
        %827 = vmatprep.subr.bf16.mxu0 0
        %828 = vmatpush1.bf16.msra.mxu0 0
        %829 = vmatprep.subr.bf16.mxu0 0
        %830 = vmatpush1.bf16.msra.mxu0 0
        %831 = vmatprep.subr.bf16.mxu0 0
        %832 = vmatpush1.bf16.msra.mxu0 0
        %833 = vmatprep.subr.bf16.mxu0 0
        %834 = vmatpush1.bf16.msra.mxu0 0
        %835 = vmatprep.subr.bf16.mxu0 0
        %836 = vmatpush1.bf16.msra.mxu0 0
        %837 = vmatprep.subr.bf16.mxu0 0
        %838 = vmatpush1.bf16.msra.mxu0 0
        %839 = vmatprep.subr.bf16.mxu0 0
        %840 = vmatpush1.bf16.msra.mxu0 0
        %841 = vmatprep.subr.bf16.mxu0 0
        %842 = vmatpush1.bf16.msra.mxu0 0
        %843 = vmatprep.subr.bf16.mxu0 0
        %844 = vmatpush1.bf16.msra.mxu0 0
        %845 = vmatprep.subr.bf16.mxu0 0
        %846 = vmatpush1.bf16.msra.mxu0 0
        %847 = vmatprep.mubr.bf16.mxu0 0
        %848 = vmatmul.mubr.bf16.gmra.mrb[0].mxu0 %v804
        %v849 = vpop.f32.mrb[0].mxu0
        %v850 = vadd.f32 %v801, %v849
        %v851 = vpop.f32.mrb[0].mxu0
        %v852 = vadd.f32 %v801, %v851
        %v853 = vpop.f32.mrb[0].mxu0
        %v854 = vpop.f32.mrb[0].mxu0
        %855 = vdwg.mxu0
        %856 = vmatprep.subr.bf16.mxu0 0
        %857 = vmatpush1.bf16.msra.mxu0 %v794
        %858 = vmatprep.subr.bf16.mxu0 0
        %859 = vmatpush1.bf16.msra.mxu0 %v813
        %860 = vmatprep.subr.bf16.mxu0 0
        %861 = vmatpush1.bf16.msra.mxu0 0
        %862 = vmatprep.subr.bf16.mxu0 0
        %863 = vmatpush1.bf16.msra.mxu0 0
        %864 = vmatprep.subr.bf16.mxu0 0
        %865 = vmatpush1.bf16.msra.mxu0 0
        %866 = vmatprep.subr.bf16.mxu0 0
        %867 = vmatpush1.bf16.msra.mxu0 0
        %868 = vmatprep.subr.bf16.mxu0 0
        %869 = vmatpush1.bf16.msra.mxu0 0
        %870 = vmatprep.subr.bf16.mxu0 0
        %871 = vmatpush1.bf16.msra.mxu0 0
        %872 = vmatprep.subr.bf16.mxu0 0
        %873 = vmatpush1.bf16.msra.mxu0 0
        %874 = vmatprep.subr.bf16.mxu0 0
        %875 = vmatpush1.bf16.msra.mxu0 0
        %876 = vmatprep.subr.bf16.mxu0 0
        %877 = vmatpush1.bf16.msra.mxu0 0
        %878 = vmatprep.subr.bf16.mxu0 0
        %879 = vmatpush1.bf16.msra.mxu0 0
        %880 = vmatprep.subr.bf16.mxu0 0
        %881 = vmatpush1.bf16.msra.mxu0 0
        %882 = vmatprep.subr.bf16.mxu0 0
        %883 = vmatpush1.bf16.msra.mxu0 0
        %884 = vmatprep.subr.bf16.mxu0 0
        %885 = vmatpush1.bf16.msra.mxu0 0
        %886 = vmatprep.subr.bf16.mxu0 0
        %887 = vmatpush1.bf16.msra.mxu0 0
        %888 = vmatprep.mubr.bf16.mxu0 0
        %889 = vmatmul.mubr.bf16.gmra.mrb[0].mxu0 %v804
        %v890 = vpop.f32.mrb[0].mxu0
        %v891 = vadd.f32 %v801, %v890
        %v892 = vpop.f32.mrb[0].mxu0
        %v893 = vpop.f32.mrb[0].mxu0
        %v894 = vpop.f32.mrb[0].mxu0
        %895 = vdwg.mxu0
        %v896 = vadd.f32 %v850, %v615
        %v897 = vadd.f32 %v852, %v616
        %v898 = vadd.f32 %v891, %v617
        %vm899 = vcmp.ge.f32.partialorder %v896, 0.0
        %vm900 = vcmp.ge.f32.partialorder %v897, 0.0
        %vm901 = vcmp.ge.f32.partialorder %v898, 0.0
        %v902 = vmul.f32 %v896, 0.1
        %v903 = vmul.f32 %v897, 0.1
        %v904 = vmul.f32 %v898, 0.1
        %v905 = vsel %vm899, %v896, %v902
        %v906 = vsel %vm900, %v897, %v903
        %v907 = vsel %vm901, %v898, %v904
        %s908 = scalar_lea.vmem %s2, 8
        %v909 = vld [vmem:[%s908] sm:$0xf]
        %s910 = scalar_lea.vmem %s3, 16
        %v911 = vld [vmem:[%s910] sm:$0xff]
        %v912 = vmul.f32 %v905, %v327
        %v913 = vmul.f32 %v906, %v328
        %v914 = vmul.f32 %v907, %v329
        %915 = vrot.lane.b32.xlu0 %v912, 5
        %v916 = vpop.permute.xlu0 %915
        %917 = vrot.lane.b32.xlu0 %v913, 5
        %v918 = vpop.permute.xlu0 %917
        %919 = vrot.lane.b32.xlu0 %v914, 5
        %v920 = vpop.permute.xlu0 %919
        %vm921 = vcmp.lt.s32.totalorder %v308, 5
        %v922 = vsel %vm921, %v918, %v920
        %v923 = vsel %vm921, %v916, %v918
        %v924 = vsel %vm921, %v920, %v916
        %925 = vrot.lane.b32.xlu0 %v912, 123
        %v926 = vpop.permute.xlu0 %925
        %927 = vrot.lane.b32.xlu0 %v913, 123
        %v928 = vpop.permute.xlu0 %927
        %929 = vrot.lane.b32.xlu0 %v914, 123
        %v930 = vpop.permute.xlu0 %929
        %vm931 = vcmp.lt.s32.totalorder %v308, 123
        %v932 = vsel %vm931, %v928, %v930
        %v933 = vsel %vm931, %v926, %v928
        %v934 = vsel %vm931, %v930, %v926
        %v935 = vpack.c.bf16 %v912, %v924
        %v936 = vpack.c.bf16 %v913, %v923
        %v937 = vpack.c.bf16 %v914, %v922
        %v938 = vpack.c.bf16 %v933, %v933
        %v939 = vpack.c.bf16 %v932, %v932
        %v940 = vpack.c.bf16 %v934, %v934
        %942 = vset.pattern.permute.xlu0 0
        %943 = vperm.xlu0 %942, %v911
        %v944 = vpop.permute.xlu0 %943
        %v947 = vsel %vm384, %v909, 0
        %v950 = vsel %vm388, %v938, 0
        %v953 = vsel %vm388, %v939, 0
        %v956 = vsel %vm388, %v940, 0
        %958 = vmatprep.subr.bf16.mxu0 %v936
        %959 = vmatpush1.bf16.msra.mxu0 %v935
        %960 = vmatprep.subr.bf16.mxu0 %v953
        %961 = vmatpush1.bf16.msra.mxu0 %v950
        %962 = vmatprep.subr.bf16.mxu0 0
        %963 = vmatpush1.bf16.msra.mxu0 0
        %964 = vmatprep.subr.bf16.mxu0 0
        %965 = vmatpush1.bf16.msra.mxu0 0
        %966 = vmatprep.subr.bf16.mxu0 0
        %967 = vmatpush1.bf16.msra.mxu0 0
        %968 = vmatprep.subr.bf16.mxu0 0
        %969 = vmatpush1.bf16.msra.mxu0 0
        %970 = vmatprep.subr.bf16.mxu0 0
        %971 = vmatpush1.bf16.msra.mxu0 0
        %972 = vmatprep.subr.bf16.mxu0 0
        %973 = vmatpush1.bf16.msra.mxu0 0
        %974 = vmatprep.subr.bf16.mxu0 0
        %975 = vmatpush1.bf16.msra.mxu0 0
        %976 = vmatprep.subr.bf16.mxu0 0
        %977 = vmatpush1.bf16.msra.mxu0 0
        %978 = vmatprep.subr.bf16.mxu0 0
        %979 = vmatpush1.bf16.msra.mxu0 0
        %980 = vmatprep.subr.bf16.mxu0 0
        %981 = vmatpush1.bf16.msra.mxu0 0
        %982 = vmatprep.subr.bf16.mxu0 0
        %983 = vmatpush1.bf16.msra.mxu0 0
        %984 = vmatprep.subr.bf16.mxu0 0
        %985 = vmatpush1.bf16.msra.mxu0 0
        %986 = vmatprep.subr.bf16.mxu0 0
        %987 = vmatpush1.bf16.msra.mxu0 0
        %988 = vmatprep.subr.bf16.mxu0 0
        %989 = vmatpush1.bf16.msra.mxu0 0
        %990 = vmatprep.mubr.bf16.mxu0 0
        %991 = vmatmul.mubr.bf16.gmra.mrb[0].mxu0 %v947
        %v992 = vpop.f32.mrb[0].mxu0
        %v993 = vadd.f32 %v944, %v992
        %v994 = vpop.f32.mrb[0].mxu0
        %v995 = vadd.f32 %v944, %v994
        %v996 = vpop.f32.mrb[0].mxu0
        %v997 = vpop.f32.mrb[0].mxu0
        %998 = vdwg.mxu0
        %999 = vmatprep.subr.bf16.mxu0 0
        %1000 = vmatpush1.bf16.msra.mxu0 %v937
        %1001 = vmatprep.subr.bf16.mxu0 0
        %1002 = vmatpush1.bf16.msra.mxu0 %v956
        %1003 = vmatprep.subr.bf16.mxu0 0
        %1004 = vmatpush1.bf16.msra.mxu0 0
        %1005 = vmatprep.subr.bf16.mxu0 0
        %1006 = vmatpush1.bf16.msra.mxu0 0
        %1007 = vmatprep.subr.bf16.mxu0 0
        %1008 = vmatpush1.bf16.msra.mxu0 0
        %1009 = vmatprep.subr.bf16.mxu0 0
        %1010 = vmatpush1.bf16.msra.mxu0 0
        %1011 = vmatprep.subr.bf16.mxu0 0
        %1012 = vmatpush1.bf16.msra.mxu0 0
        %1013 = vmatprep.subr.bf16.mxu0 0
        %1014 = vmatpush1.bf16.msra.mxu0 0
        %1015 = vmatprep.subr.bf16.mxu0 0
        %1016 = vmatpush1.bf16.msra.mxu0 0
        %1017 = vmatprep.subr.bf16.mxu0 0
        %1018 = vmatpush1.bf16.msra.mxu0 0
        %1019 = vmatprep.subr.bf16.mxu0 0
        %1020 = vmatpush1.bf16.msra.mxu0 0
        %1021 = vmatprep.subr.bf16.mxu0 0
        %1022 = vmatpush1.bf16.msra.mxu0 0
        %1023 = vmatprep.subr.bf16.mxu0 0
        %1024 = vmatpush1.bf16.msra.mxu0 0
        %1025 = vmatprep.subr.bf16.mxu0 0
        %1026 = vmatpush1.bf16.msra.mxu0 0
        %1027 = vmatprep.subr.bf16.mxu0 0
        %1028 = vmatpush1.bf16.msra.mxu0 0
        %1029 = vmatprep.subr.bf16.mxu0 0
        %1030 = vmatpush1.bf16.msra.mxu0 0
        %1031 = vmatprep.mubr.bf16.mxu0 0
        %1032 = vmatmul.mubr.bf16.gmra.mrb[0].mxu0 %v947
        %v1033 = vpop.f32.mrb[0].mxu0
        %v1034 = vadd.f32 %v944, %v1033
        %v1035 = vpop.f32.mrb[0].mxu0
        %v1036 = vpop.f32.mrb[0].mxu0
        %v1037 = vpop.f32.mrb[0].mxu0
        %1038 = vdwg.mxu0
        %vm1039 = vcmp.ge.f32.partialorder %v993, 0.0
        %vm1040 = vcmp.ge.f32.partialorder %v995, 0.0
        %vm1041 = vcmp.ge.f32.partialorder %v1034, 0.0
        %v1042 = vmul.f32 %v993, 0.1
        %v1043 = vmul.f32 %v995, 0.1
        %v1044 = vmul.f32 %v1034, 0.1
        %v1045 = vsel %vm1039, %v993, %v1042
        %v1046 = vsel %vm1040, %v995, %v1043
        %v1047 = vsel %vm1041, %v1034, %v1044
        %s1048 = scalar_lea.vmem [#allocation5], 8
        %v1049 = vld [vmem:[%s1048] sm:$0xf]
        %s1050 = scalar_lea.vmem %s5, 16
        %v1051 = vld [vmem:[%s1050] sm:$0xff]
        %v1052 = vmul.f32 %v1045, %v327
        %v1053 = vmul.f32 %v1046, %v328
        %v1054 = vmul.f32 %v1047, %v329
        %1055 = vrot.lane.b32.xlu0 %v1052, 1
        %v1056 = vpop.permute.xlu0 %1055
        %1057 = vrot.lane.b32.xlu0 %v1053, 1
        %v1058 = vpop.permute.xlu0 %1057
        %1059 = vrot.lane.b32.xlu0 %v1054, 1
        %v1060 = vpop.permute.xlu0 %1059
        %v1061 = vsel %vm359, %v1056, %v1058
        %v1062 = vsel %vm359, %v1060, %v1056
        %1063 = vrot.lane.b32.xlu0 %v1052, 127
        %v1064 = vpop.permute.xlu0 %1063
        %1065 = vrot.lane.b32.xlu0 %v1053, 127
        %v1066 = vpop.permute.xlu0 %1065
        %1067 = vrot.lane.b32.xlu0 %v1054, 127
        %v1068 = vpop.permute.xlu0 %1067
        %v1069 = vsel %vm369, %v1066, %v1068
        %v1070 = vsel %vm369, %v1064, %v1066
        %v1071 = vpack.c.bf16 %v1052, %v1062
        %v1072 = vpack.c.bf16 %v1053, %v1061
        %v1073 = vpack.c.bf16 %v1070, %v1070
        %v1074 = vpack.c.bf16 %v1069, %v1069
        %1076 = vset.pattern.permute.xlu0 0
        %1077 = vperm.xlu0 %1076, %v1051
        %v1078 = vpop.permute.xlu0 %1077
        %v1081 = vsel %vm384, %v1049, 0
        %v1084 = vsel %vm388, %v1073, 0
        %v1087 = vsel %vm388, %v1074, 0
        %1089 = vmatprep.subr.bf16.mxu0 %v1072
        %1090 = vmatpush1.bf16.msra.mxu0 %v1071
        %1091 = vmatprep.subr.bf16.mxu0 %v1087
        %1092 = vmatpush1.bf16.msra.mxu0 %v1084
        %1093 = vmatprep.subr.bf16.mxu0 0
        %1094 = vmatpush1.bf16.msra.mxu0 0
        %1095 = vmatprep.subr.bf16.mxu0 0
        %1096 = vmatpush1.bf16.msra.mxu0 0
        %1097 = vmatprep.subr.bf16.mxu0 0
        %1098 = vmatpush1.bf16.msra.mxu0 0
        %1099 = vmatprep.subr.bf16.mxu0 0
        %1100 = vmatpush1.bf16.msra.mxu0 0
        %1101 = vmatprep.subr.bf16.mxu0 0
        %1102 = vmatpush1.bf16.msra.mxu0 0
        %1103 = vmatprep.subr.bf16.mxu0 0
        %1104 = vmatpush1.bf16.msra.mxu0 0
        %1105 = vmatprep.subr.bf16.mxu0 0
        %1106 = vmatpush1.bf16.msra.mxu0 0
        %1107 = vmatprep.subr.bf16.mxu0 0
        %1108 = vmatpush1.bf16.msra.mxu0 0
        %1109 = vmatprep.subr.bf16.mxu0 0
        %1110 = vmatpush1.bf16.msra.mxu0 0
        %1111 = vmatprep.subr.bf16.mxu0 0
        %1112 = vmatpush1.bf16.msra.mxu0 0
        %1113 = vmatprep.subr.bf16.mxu0 0
        %1114 = vmatpush1.bf16.msra.mxu0 0
        %1115 = vmatprep.subr.bf16.mxu0 0
        %1116 = vmatpush1.bf16.msra.mxu0 0
        %1117 = vmatprep.subr.bf16.mxu0 0
        %1118 = vmatpush1.bf16.msra.mxu0 0
        %1119 = vmatprep.subr.bf16.mxu0 0
        %1120 = vmatpush1.bf16.msra.mxu0 0
        %1121 = vmatprep.mubr.bf16.mxu0 0
        %1122 = vmatmul.mubr.bf16.gmra.mrb[0].mxu0 %v1081
        %v1123 = vpop.f32.mrb[0].mxu0
        %v1124 = vpop.f32.mrb[0].mxu0
        %v1125 = vadd.f32 %v1078, %v1124
        %v1126 = vpop.f32.mrb[0].mxu0
        %v1127 = vpop.f32.mrb[0].mxu0
        %1128 = vdwg.mxu0
        %v1129 = vadd.f32 %v1125, %v897
        %1130 = vst [vmem:[%s255] sm:$0xff] %v1129
        %s1131 = sand.u32 %s155, 1
        %s1132 = scalar_lea.sflag [#allocation7], %s1131
        %s1133 = sand.u32 %s155, 1
        %s1134 = smul.addr %s1133, 8
        %s1135 = scalar_lea.vmem [#allocation8], %s1134
        // Predicated region
        $region53: #{tpu_custom_call.1} parent=39 // pred_check
          %p1136 = pneg %p165
        $region54: #{tpu_custom_call.1} parent=39 // pred_check_branch
          %1138 = sbr.rel (%p1136) target = $region56
        $region55: #{tpu_custom_call.1} parent=39 // pred_region
          %s1140 = ssub.s32 128, 128
          %1141 = vsyncadd %s1132, %s1140
          %s1142 = smul.addr %s25, 3
          %s1143 = sadd.s32 %s26, %s1142
          %s1144 = smul.addr %s1143, 128
          %s1145 = scalar_lea.hbm %s6, %s1144
          %s1147 = sshll.u32 %s1135, 4
          %s1148 = int_to_ptr.vmem [resolvable:$true] %s1147
          %1150 = dma.vmem_to_hbm [thread:$0]  %s1148, 128, %s1145, %s1132
        $region56: #{tpu_custom_call.1} parent=39 // pred_fallthru
          _
      $region40: #{tpu_custom_call.1} parent=5 // pred_fallthru
        _
      %p1151 = scmp.le.s32.totalorder 2, %s16
      // Predicated region
      $region57: #{tpu_custom_call.1} parent=5 // pred_check
        %p1152 = pneg %p1151
      $region58: #{tpu_custom_call.1} parent=5 // pred_check_branch
        %1154 = sbr.rel (%p1152) target = $region60
      $region59: #{tpu_custom_call.1} parent=5 // pred_region
        %s1155 = ssub.s32 %s16, 2
        // Predicated region
        $region61: #{tpu_custom_call.1} parent=59 // pred_check
          %p1156 = pneg %p171
        $region62: #{tpu_custom_call.1} parent=59 // pred_check_branch
          %1158 = sbr.rel (%p1156) target = $region64
        $region63: #{tpu_custom_call.1} parent=59 // pred_region
          %s1159 = sand.u32 %s156, 1
          %s1160 = scalar_lea.sflag [#allocation7], %s1159
          %s1161 = sand.u32 %s156, 1
          %s1162 = smul.addr %s1161, 8
          %s1163 = scalar_lea.vmem [#allocation8], %s1162
          %1164 = dma.done %s1160, 128
        $region64: #{tpu_custom_call.1} parent=59 // pred_fallthru
          _
      $region60: #{tpu_custom_call.1} parent=5 // pred_fallthru
        _
    $region6: #{tpu_custom_call.1} parent=1 // loop_footer
      %s20 = sadd.s32 1, %s16
    $region7: #{tpu_custom_call.1} parent=1 // loop_footer_branch
      %15 = sbr.rel target = $region3
    $region8: #{tpu_custom_call.1} parent=1 // loop_exit
      _
    %1165 = vsyncpa [#allocation6], 1
    %s1166 = scalar_lea.sflag [#allocation6], 1
    %1167 = vsyncpa %s1166, 1
    %1168 = vsyncpa [#allocation7], 1
    %s1169 = scalar_lea.sflag [#allocation7], 1
    %1170 = vsyncpa %s1169, 1
  %1171 = vsyncmov [#allocation4]
  %s1172 = vpop.sfrf %1171
  %p1173 = scmp.eq.s32.totalorder %s1172, 0
  %p1174 = pneg %p1173
  %1176 = shalt.err (%p1174)
  %s1177 = scalar_lea.sflag [#allocation4], 1
  %1178 = vsyncmov %s1177
  %s1179 = vpop.sfrf %1178
  %p1180 = scmp.eq.s32.totalorder %s1179, 0
  %p1181 = pneg %p1180
  %1183 = shalt.err (%p1181)

</llo_original>
